<compile_context>
chip_gen: v5e
topology: v5e:2x2
jax: 0.10.0
libtpu: 0.0.40
codegen_flags: <defaults>
</compile_context>

<pallas_src>
import functools

import jax
import jax.numpy as jnp
from jax.experimental import pallas as pl
from jax.experimental.pallas import tpu as pltpu

INPUT_SIZE = 64
HIDDEN_SIZE = 64
OUTPUT_SIZE = 64
GROUPS = 8          # linear_groups
NUM_LAYERS = 1


def _round_up(x, m):
    return ((x + m - 1) // m) * m


def squeezed_gru_s_kernel(x_ref, wx_ref, bx_ref, wh_ref, bh_ref, h0_ref,
                          wout_ref,
                          y_ref, h_out_ref,
                          gi_s, hs_s, hc_s,
                          *, t_blk, last_idx):
    i = pl.program_id(0)
    H = hc_s.shape[1]

    # Hidden-state carry across grid blocks lives in a tiny VMEM scratch; it is
    # only read/written once per block (the per-step carry stays in vregs).
    @pl.when(i == 0)
    def _init():
        hc_s[...] = h0_ref[...]

    # Fused block input projection: one (t_blk, 64)@(64, 192) MXU pass.
    # bx already contains (b_ih_r + b_hh_r | b_ih_z + b_hh_z | b_ih_n).
    gi_s[...] = jnp.dot(x_ref[...], wx_ref[...],
                        preferred_element_type=jnp.float32) + bx_ref[...]

    wh = wh_ref[...]        # (64, 192) packed r|z|n recurrent weight (resident)
    bh = bh_ref[...]        # (1, 192) = [0 | 0 | b_hh_n]
    h = hc_s[...]           # (1, 64)

    n_grp = t_blk // 8

    def _group(g, h):
        base = pl.multiple_of(g * 8, 8)
        gi = gi_s[pl.ds(base, 8), :]                  # aligned (8, 192) load
        rows = []
        for u in range(8):                            # unrolled recurrence
            gi_u = gi[u:u + 1, :]                     # static row slice
            # One packed recurrent matmul per timestep (r|z|n in 192 lanes).
            gh = jnp.dot(h, wh, preferred_element_type=jnp.float32) + bh
            # Fused r/z sigmoid over 128 lanes, then split.
            rz = jax.nn.sigmoid(gi_u[:, :2 * H] + gh[:, :2 * H])
            r = rz[:, 0:H]
            z = rz[:, H:2 * H]
            n = jnp.tanh(gi_u[:, 2 * H:] + r * gh[:, 2 * H:])
            h = n + z * (h - n)                       # == (1-z)*n + z*h
            rows.append(h)
        hs_s[pl.ds(base, 8), :] = jnp.concatenate(rows, axis=0)  # aligned store
        return h

    h_final = jax.lax.fori_loop(0, n_grp, _group, h)

    hc_s[...] = h_final
    h_out_ref[...] = h_final

    # Only the last grid block can contain padded timesteps: the exact final
    # hidden state is the (statically known) row `last_idx` of that block.
    @pl.when(i == pl.num_programs(0) - 1)
    def _exact_final_h():
        h_out_ref[...] = hs_s[last_idx:last_idx + 1, :]

    # linear_out epilogue: one block-diagonal matmul over the whole block.
    y_ref[...] = jnp.dot(hs_s[...], wout_ref[...],
                         preferred_element_type=jnp.float32)


def prepare_params(params):
    """Fold linear_in / linear_out / biases into packed dense weights (offline)."""
    w_in = params["w_in"]        # (groups, in/g, H/g)
    w_ih = params["w_ih"]        # (3H, H)
    w_hh = params["w_hh"]        # (3H, H)
    b_ih = params["b_ih"]        # (3H,)
    b_hh = params["b_hh"]        # (3H,)
    w_out = params["w_out"]      # (groups, H/g, out/g)

    groups = w_in.shape[0]
    H = w_hh.shape[1]

    w_in_bd = jax.scipy.linalg.block_diag(*[w_in[g] for g in range(groups)])
    # linear_in has Identity activation, so it folds into the GRU input weight.
    w_x = w_in_bd @ w_ih.T                                     # (in, 3H) r|z|n
    w_h = w_hh.T                                               # (H, 3H)  r|z|n
    # r/z biases (input + hidden) and the n input bias go with the input
    # projection; the n hidden bias goes with the recurrent dot (scaled by r).
    b_x = jnp.concatenate([b_ih[:2 * H] + b_hh[:2 * H],
                           b_ih[2 * H:]]).reshape(1, 3 * H)
    b_h = jnp.concatenate([jnp.zeros((2 * H,), b_hh.dtype),
                           b_hh[2 * H:]]).reshape(1, 3 * H)
    w_out_bd = jax.scipy.linalg.block_diag(*[w_out[g] for g in range(groups)])

    return dict(
        wx=jnp.asarray(w_x, jnp.float32),
        bx=jnp.asarray(b_x, jnp.float32),
        wh=jnp.asarray(w_h, jnp.float32),
        bh=jnp.asarray(b_h, jnp.float32),
        w_out=jnp.asarray(w_out_bd, jnp.float32),
    )
    # TODO(synk): optional bf16 weight cast (v6e/v7x MXU speedup) requires
    # relaxing the 1e-4 tolerance; kept f32 here for exactness.


def squeezed_gru_s(x, h, prepped, t_blk=256):
    """x: (1, T, input_size) batch_first; h: (num_layers, 1, hidden).

    Returns (y (1, T, output_size), h_new (num_layers, 1, hidden)).  T=1 is
    exactly the PyTorch module forward; T>1 is T sequential streaming steps.
    """
    in_size = prepped["wx"].shape[0]
    H = prepped["w_out"].shape[0]
    out_size = prepped["w_out"].shape[1]
    _, T, _ = x.shape

    # Block size: multiple of 8 (sublane tile), no larger than needed.
    t_blk = max(8, _round_up(min(t_blk, T), 8))
    t_pad = _round_up(T, t_blk)
    n_blocks = t_pad // t_blk
    last_idx = (T - 1) - (t_pad - t_blk)   # final valid row within last block

    xs = x.reshape(T, in_size).astype(jnp.float32)
    if t_pad != T:
        xs = jnp.pad(xs, ((0, t_pad - T), (0, 0)))
    h0 = h.reshape(1, H).astype(jnp.float32)

    kernel = functools.partial(squeezed_gru_s_kernel,
                               t_blk=t_blk, last_idx=last_idx)

    def _resident(shape):
        # Full-array block, constant index map -> stays resident in VMEM.
        return pl.BlockSpec(shape, lambda i: (0, 0))

    in_specs = [
        pl.BlockSpec((t_blk, in_size), lambda i: (i, 0)),   # x block
        _resident((in_size, 3 * H)),                        # wx (packed)
        _resident((1, 3 * H)),                              # bx (packed)
        _resident((H, 3 * H)),                              # wh (packed)
        _resident((1, 3 * H)),                              # bh (packed)
        _resident((1, H)),                                  # h0
        _resident((H, out_size)),                           # w_out (block-diag)
    ]
    out_specs = (
        pl.BlockSpec((t_blk, out_size), lambda i: (i, 0)),  # y block
        pl.BlockSpec((1, H), lambda i: (0, 0)),             # final h (resident)
    )
    scratch = [
        pltpu.VMEM((t_blk, 3 * H), jnp.float32),   # packed input projections
        pltpu.VMEM((t_blk, H), jnp.float32),       # hidden-state sequence
        pltpu.VMEM((1, H), jnp.float32),           # cross-block hidden carry
    ]

    y, h_new = pl.pallas_call(
        kernel,
        out_shape=(jax.ShapeDtypeStruct((t_pad, out_size), jnp.float32),
                   jax.ShapeDtypeStruct((1, H), jnp.float32)),
        grid_spec=pltpu.PrefetchScalarGridSpec(
            num_scalar_prefetch=0,
            grid=(n_blocks,),
            in_specs=in_specs,
            out_specs=out_specs,
            scratch_shapes=scratch),
        compiler_params=pltpu.CompilerParams(
            dimension_semantics=("arbitrary",)),
    )(xs, prepped["wx"], prepped["bx"], prepped["wh"], prepped["bh"],
      h0, prepped["w_out"])

    return (y[:T].reshape(1, T, out_size),
            h_new.reshape(NUM_LAYERS, 1, H))


def reference_forward(x, h, params):
    """Pure-JAX replica of T sequential PyTorch module forwards."""
    groups = params["w_in"].shape[0]
    H = params["w_hh"].shape[1]
    _, T, _ = x.shape
    h_t = h.reshape(1, H)
    ys = []
    for t in range(T):
        xt = x[0, t].reshape(groups, 1, -1)
        xl = jnp.matmul(xt, params["w_in"]).reshape(1, H)       # linear_in
        gi = xl @ params["w_ih"].T + params["b_ih"]
        gh = h_t @ params["w_hh"].T + params["b_hh"]
        r = jax.nn.sigmoid(gi[:, :H] + gh[:, :H])
        z = jax.nn.sigmoid(gi[:, H:2 * H] + gh[:, H:2 * H])
        n = jnp.tanh(gi[:, 2 * H:] + r * gh[:, 2 * H:])
        h_t = (1.0 - z) * n + z * h_t
        hg = h_t.reshape(groups, 1, -1)
        ys.append(jnp.matmul(hg, params["w_out"]).reshape(1, -1))  # linear_out
    y = jnp.stack(ys, axis=0).reshape(1, T, -1)
    return y, h_t.reshape(NUM_LAYERS, 1, H)


def init_params(key):
    ks = jax.random.split(key, 6)
    ws_in = INPUT_SIZE // GROUPS
    hg = HIDDEN_SIZE // GROUPS
    og = OUTPUT_SIZE // GROUPS
    # GroupedLinearEinsum weights: kaiming_uniform_(a=sqrt(5)) -> uniform bound
    b_in = 1.0 / (ws_in * hg) ** 0.5
    b_out = 1.0 / (hg * og) ** 0.5
    w_in = jax.random.uniform(ks[0], (GROUPS, ws_in, hg), jnp.float32, -b_in, b_in)
    w_out = jax.random.uniform(ks[1], (GROUPS, hg, og), jnp.float32, -b_out, b_out)
    # nn.GRU params: uniform(-1/sqrt(H), 1/sqrt(H)), gate order (r, z, n)
    k = 1.0 / (HIDDEN_SIZE ** 0.5)
    w_ih = jax.random.uniform(ks[2], (3 * HIDDEN_SIZE, HIDDEN_SIZE), jnp.float32, -k, k)
    w_hh = jax.random.uniform(ks[3], (3 * HIDDEN_SIZE, HIDDEN_SIZE), jnp.float32, -k, k)
    b_ih = jax.random.uniform(ks[4], (3 * HIDDEN_SIZE,), jnp.float32, -k, k)
    b_hh = jax.random.uniform(ks[5], (3 * HIDDEN_SIZE,), jnp.float32, -k, k)
    return dict(w_in=w_in, w_ih=w_ih, w_hh=w_hh, b_ih=b_ih, b_hh=b_hh, w_out=w_out)


if __name__ == "__main__":
    key = jax.random.PRNGKey(0)
    k_p, k_x1, k_h, k_xT = jax.random.split(key, 4)
    params = init_params(k_p)
    prepped = prepare_params(params)

    # --- 1) single streaming step: exact shapes of the PyTorch module forward ---
    x1 = jax.random.normal(k_x1, (1, 1, INPUT_SIZE), jnp.float32)
    h0 = jax.random.normal(k_h, (NUM_LAYERS, 1, HIDDEN_SIZE), jnp.float32)

    y1, h1 = squeezed_gru_s(x1, h0, prepped)
    y1 = jax.block_until_ready(y1)
    h1 = jax.block_until_ready(h1)

    y1_ref, h1_ref = reference_forward(x1, h0, params)
    assert y1.shape == (1, 1, OUTPUT_SIZE) and h1.shape == (NUM_LAYERS, 1, HIDDEN_SIZE)
    assert jnp.allclose(y1, y1_ref, atol=1e-4, rtol=1e-4)
    assert jnp.allclose(h1, h1_ref, atol=1e-4, rtol=1e-4)

    # --- 2) time-batched streaming, default block (single big block, no pad) ---
    T = 40
    xT = jax.random.normal(k_xT, (1, T, INPUT_SIZE), jnp.float32)
    yT_ref, hT_ref = reference_forward(xT, h0, params)

    yA, hA = squeezed_gru_s(xT, h0, prepped)              # t_blk -> 40
    yA = jax.block_until_ready(yA)
    hA = jax.block_until_ready(hA)
    assert yA.shape == (1, T, OUTPUT_SIZE) and hA.shape == (NUM_LAYERS, 1, HIDDEN_SIZE)
    assert jnp.allclose(yA, yT_ref, atol=1e-4, rtol=1e-4)
    assert jnp.allclose(hA, hT_ref, atol=1e-4, rtol=1e-4)

    # --- 3) multi-block grid with a padded tail block (40 steps, blocks of 16) ---
    yB, hB = squeezed_gru_s(xT, h0, prepped, t_blk=16)
    yB = jax.block_until_ready(yB)
    hB = jax.block_until_ready(hB)
    assert jnp.allclose(yB, yT_ref, atol=1e-4, rtol=1e-4)
    assert jnp.allclose(hB, hT_ref, atol=1e-4, rtol=1e-4)

    print("KERNEL_OK")
</pallas_src>

<mosaic_0001>
module attributes {stable_mosaic.version = 11 : i64} {
  func.func @squeezed_gru_s_kernel(%arg0: i32, %arg1: memref<8x64xf32, #tpu.memory_space<vmem>>, %arg2: memref<64x192xf32, #tpu.memory_space<vmem>>, %arg3: memref<1x192xf32, #tpu.memory_space<vmem>>, %arg4: memref<64x192xf32, #tpu.memory_space<vmem>>, %arg5: memref<1x192xf32, #tpu.memory_space<vmem>>, %arg6: memref<1x64xf32, #tpu.memory_space<vmem>>, %arg7: memref<64x64xf32, #tpu.memory_space<vmem>>, %arg8: memref<8x64xf32, #tpu.memory_space<vmem>>, %arg9: memref<1x64xf32, #tpu.memory_space<vmem>>, %arg10: memref<8x192xf32, #tpu.memory_space<vmem>>, %arg11: memref<8x64xf32, #tpu.memory_space<vmem>>, %arg12: memref<1x64xf32, #tpu.memory_space<vmem>>) attributes {dimension_semantics = [#tpu.dimension_semantics<arbitrary>], iteration_bounds = array<i64: 1>, scalar_prefetch = 0 : i64, scratch_operands = 3 : i64, tpu.core_type = #tpu.core_type<tc>, window_params = [{transform_indices = @transform_0, window_bounds = array<i64: 8, 64>}, {pipeline_mode = #tpu.pipeline_mode<synchronous>, transform_indices = @transform_1, window_bounds = array<i64: 64, 192>}, {pipeline_mode = #tpu.pipeline_mode<synchronous>, transform_indices = @transform_2, window_bounds = array<i64: 1, 192>}, {pipeline_mode = #tpu.pipeline_mode<synchronous>, transform_indices = @transform_3, window_bounds = array<i64: 64, 192>}, {pipeline_mode = #tpu.pipeline_mode<synchronous>, transform_indices = @transform_4, window_bounds = array<i64: 1, 192>}, {pipeline_mode = #tpu.pipeline_mode<synchronous>, transform_indices = @transform_5, window_bounds = array<i64: 1, 64>}, {pipeline_mode = #tpu.pipeline_mode<synchronous>, transform_indices = @transform_6, window_bounds = array<i64: 64, 64>}, {transform_indices = @transform_7, window_bounds = array<i64: 8, 64>}, {pipeline_mode = #tpu.pipeline_mode<synchronous>, transform_indices = @transform_8, window_bounds = array<i64: 1, 64>}]} {
    %c0_i32 = arith.constant 0 : i32
    %0 = arith.cmpi eq, %arg0, %c0_i32 : i32
    %1 = arith.extui %0 : i1 to i32
    %c0_i32_0 = arith.constant 0 : i32
    %2 = arith.cmpi ne, %1, %c0_i32_0 : i32
    scf.if %2 {
      %c0_46 = arith.constant 0 : index
      %c0_47 = arith.constant 0 : index
      %197 = vector.load %arg6[%c0_46, %c0_47] : memref<1x64xf32, #tpu.memory_space<vmem>>, vector<1x64xf32>
      %c0_48 = arith.constant 0 : index
      %c0_49 = arith.constant 0 : index
      %198 = vector.load %arg12[%c0_48, %c0_49] : memref<1x64xf32, #tpu.memory_space<vmem>>, vector<1x64xf32>
      tpu.vector_store %arg12[%c0_48, %c0_49], %197 {strides = array<i32>} : memref<1x64xf32, #tpu.memory_space<vmem>>, vector<1x64xf32>,
    } else {
    }
    %c0 = arith.constant 0 : index
    %c0_1 = arith.constant 0 : index
    %3 = vector.load %arg1[%c0, %c0_1] : memref<8x64xf32, #tpu.memory_space<vmem>>, vector<8x64xf32>
    %c0_2 = arith.constant 0 : index
    %c0_3 = arith.constant 0 : index
    %4 = vector.load %arg2[%c0_2, %c0_3] : memref<64x192xf32, #tpu.memory_space<vmem>>, vector<64x192xf32>
    %cst = arith.constant dense<0.000000e+00> : vector<8x192xf32>
    %5 = tpu.matmul %3, %4, %cst {dimension_numbers = #tpu.dot_dimension_numbers<[1], [0], [0], [1], [0, 0, 1, 1], [], []>} : vector<8x64xf32>, vector<64x192xf32>, vector<8x192xf32> -> vector<8x192xf32>
    %c0_4 = arith.constant 0 : index
    %c0_5 = arith.constant 0 : index
    %6 = vector.load %arg3[%c0_4, %c0_5] : memref<1x192xf32, #tpu.memory_space<vmem>>, vector<1x192xf32>
    %7 = vector.broadcast %6 : vector<1x192xf32> to vector<8x192xf32>
    %8 = arith.addf %5, %7 : vector<8x192xf32>
    %c0_6 = arith.constant 0 : index
    %c0_7 = arith.constant 0 : index
    %9 = vector.load %arg10[%c0_6, %c0_7] : memref<8x192xf32, #tpu.memory_space<vmem>>, vector<8x192xf32>
    tpu.vector_store %arg10[%c0_6, %c0_7], %8 {strides = array<i32>} : memref<8x192xf32, #tpu.memory_space<vmem>>, vector<8x192xf32>,
    %c0_8 = arith.constant 0 : index
    %c0_9 = arith.constant 0 : index
    %10 = vector.load %arg4[%c0_8, %c0_9] : memref<64x192xf32, #tpu.memory_space<vmem>>, vector<64x192xf32>
    %c0_10 = arith.constant 0 : index
    %c0_11 = arith.constant 0 : index
    %11 = vector.load %arg5[%c0_10, %c0_11] : memref<1x192xf32, #tpu.memory_space<vmem>>, vector<1x192xf32>
    %c0_12 = arith.constant 0 : index
    %c0_13 = arith.constant 0 : index
    %12 = vector.load %arg12[%c0_12, %c0_13] : memref<1x64xf32, #tpu.memory_space<vmem>>, vector<1x64xf32>
    %c0_i32_14 = arith.constant 0 : i32
    %c8_i32 = arith.constant 8 : i32
    %13 = arith.muli %c0_i32_14, %c8_i32 : i32
    %14 = tpu.assume_multiple %13, 8 : i32
    %15 = arith.index_cast %14 : i32 to index
    %c0_15 = arith.constant 0 : index
    %16 = vector.load %arg10[%15, %c0_15] : memref<8x192xf32, #tpu.memory_space<vmem>>, vector<8x192xf32>
    %17 = vector.extract_strided_slice %16 {offsets = [0, 0], sizes = [1, 192], strides = [1, 1]} : vector<8x192xf32> to vector<1x192xf32>
    %cst_16 = arith.constant dense<0.000000e+00> : vector<1x192xf32>
    %18 = tpu.matmul %12, %10, %cst_16 {dimension_numbers = #tpu.dot_dimension_numbers<[1], [0], [0], [1], [0, 0, 1, 1], [], []>} : vector<1x64xf32>, vector<64x192xf32>, vector<1x192xf32> -> vector<1x192xf32>
    %19 = arith.addf %18, %11 : vector<1x192xf32>
    %20 = vector.extract_strided_slice %17 {offsets = [0, 0], sizes = [1, 128], strides = [1, 1]} : vector<1x192xf32> to vector<1x128xf32>
    %21 = vector.extract_strided_slice %19 {offsets = [0, 0], sizes = [1, 128], strides = [1, 1]} : vector<1x192xf32> to vector<1x128xf32>
    %22 = arith.addf %20, %21 : vector<1x128xf32>
    %23 = arith.negf %22 : vector<1x128xf32>
    %24 = math.exp %23 : vector<1x128xf32>
    %cst_17 = arith.constant 1.000000e+00 : f32
    %25 = vector.broadcast %cst_17 : f32 to vector<1x128xf32>
    %26 = arith.addf %25, %24 : vector<1x128xf32>
    %27 = arith.divf %25, %26 : vector<1x128xf32>
    %28 = vector.extract_strided_slice %27 {offsets = [0, 0], sizes = [1, 64], strides = [1, 1]} : vector<1x128xf32> to vector<1x64xf32>
    %29 = vector.extract_strided_slice %27 {offsets = [0, 64], sizes = [1, 64], strides = [1, 1]} : vector<1x128xf32> to vector<1x64xf32>
    %30 = vector.extract_strided_slice %17 {offsets = [0, 128], sizes = [1, 64], strides = [1, 1]} : vector<1x192xf32> to vector<1x64xf32>
    %31 = vector.extract_strided_slice %19 {offsets = [0, 128], sizes = [1, 64], strides = [1, 1]} : vector<1x192xf32> to vector<1x64xf32>
    %32 = arith.mulf %28, %31 : vector<1x64xf32>
    %33 = arith.addf %30, %32 : vector<1x64xf32>
    %34 = math.tanh %33 : vector<1x64xf32>
    %35 = arith.subf %12, %34 : vector<1x64xf32>
    %36 = arith.mulf %29, %35 : vector<1x64xf32>
    %37 = arith.addf %34, %36 : vector<1x64xf32>
    %38 = vector.extract_strided_slice %16 {offsets = [1, 0], sizes = [1, 192], strides = [1, 1]} : vector<8x192xf32> to vector<1x192xf32>
    %cst_18 = arith.constant dense<0.000000e+00> : vector<1x192xf32>
    %39 = tpu.matmul %37, %10, %cst_18 {dimension_numbers = #tpu.dot_dimension_numbers<[1], [0], [0], [1], [0, 0, 1, 1], [], []>} : vector<1x64xf32>, vector<64x192xf32>, vector<1x192xf32> -> vector<1x192xf32>
    %40 = arith.addf %39, %11 : vector<1x192xf32>
    %41 = vector.extract_strided_slice %38 {offsets = [0, 0], sizes = [1, 128], strides = [1, 1]} : vector<1x192xf32> to vector<1x128xf32>
    %42 = vector.extract_strided_slice %40 {offsets = [0, 0], sizes = [1, 128], strides = [1, 1]} : vector<1x192xf32> to vector<1x128xf32>
    %43 = arith.addf %41, %42 : vector<1x128xf32>
    %44 = arith.negf %43 : vector<1x128xf32>
    %45 = math.exp %44 : vector<1x128xf32>
    %cst_19 = arith.constant 1.000000e+00 : f32
    %46 = vector.broadcast %cst_19 : f32 to vector<1x128xf32>
    %47 = arith.addf %46, %45 : vector<1x128xf32>
    %48 = arith.divf %46, %47 : vector<1x128xf32>
    %49 = vector.extract_strided_slice %48 {offsets = [0, 0], sizes = [1, 64], strides = [1, 1]} : vector<1x128xf32> to vector<1x64xf32>
    %50 = vector.extract_strided_slice %48 {offsets = [0, 64], sizes = [1, 64], strides = [1, 1]} : vector<1x128xf32> to vector<1x64xf32>
    %51 = vector.extract_strided_slice %38 {offsets = [0, 128], sizes = [1, 64], strides = [1, 1]} : vector<1x192xf32> to vector<1x64xf32>
    %52 = vector.extract_strided_slice %40 {offsets = [0, 128], sizes = [1, 64], strides = [1, 1]} : vector<1x192xf32> to vector<1x64xf32>
    %53 = arith.mulf %49, %52 : vector<1x64xf32>
    %54 = arith.addf %51, %53 : vector<1x64xf32>
    %55 = math.tanh %54 : vector<1x64xf32>
    %56 = arith.subf %37, %55 : vector<1x64xf32>
    %57 = arith.mulf %50, %56 : vector<1x64xf32>
    %58 = arith.addf %55, %57 : vector<1x64xf32>
    %59 = vector.extract_strided_slice %16 {offsets = [2, 0], sizes = [1, 192], strides = [1, 1]} : vector<8x192xf32> to vector<1x192xf32>
    %cst_20 = arith.constant dense<0.000000e+00> : vector<1x192xf32>
    %60 = tpu.matmul %58, %10, %cst_20 {dimension_numbers = #tpu.dot_dimension_numbers<[1], [0], [0], [1], [0, 0, 1, 1], [], []>} : vector<1x64xf32>, vector<64x192xf32>, vector<1x192xf32> -> vector<1x192xf32>
    %61 = arith.addf %60, %11 : vector<1x192xf32>
    %62 = vector.extract_strided_slice %59 {offsets = [0, 0], sizes = [1, 128], strides = [1, 1]} : vector<1x192xf32> to vector<1x128xf32>
    %63 = vector.extract_strided_slice %61 {offsets = [0, 0], sizes = [1, 128], strides = [1, 1]} : vector<1x192xf32> to vector<1x128xf32>
    %64 = arith.addf %62, %63 : vector<1x128xf32>
    %65 = arith.negf %64 : vector<1x128xf32>
    %66 = math.exp %65 : vector<1x128xf32>
    %cst_21 = arith.constant 1.000000e+00 : f32
    %67 = vector.broadcast %cst_21 : f32 to vector<1x128xf32>
    %68 = arith.addf %67, %66 : vector<1x128xf32>
    %69 = arith.divf %67, %68 : vector<1x128xf32>
    %70 = vector.extract_strided_slice %69 {offsets = [0, 0], sizes = [1, 64], strides = [1, 1]} : vector<1x128xf32> to vector<1x64xf32>
    %71 = vector.extract_strided_slice %69 {offsets = [0, 64], sizes = [1, 64], strides = [1, 1]} : vector<1x128xf32> to vector<1x64xf32>
    %72 = vector.extract_strided_slice %59 {offsets = [0, 128], sizes = [1, 64], strides = [1, 1]} : vector<1x192xf32> to vector<1x64xf32>
    %73 = vector.extract_strided_slice %61 {offsets = [0, 128], sizes = [1, 64], strides = [1, 1]} : vector<1x192xf32> to vector<1x64xf32>
    %74 = arith.mulf %70, %73 : vector<1x64xf32>
    %75 = arith.addf %72, %74 : vector<1x64xf32>
    %76 = math.tanh %75 : vector<1x64xf32>
    %77 = arith.subf %58, %76 : vector<1x64xf32>
    %78 = arith.mulf %71, %77 : vector<1x64xf32>
    %79 = arith.addf %76, %78 : vector<1x64xf32>
    %80 = vector.extract_strided_slice %16 {offsets = [3, 0], sizes = [1, 192], strides = [1, 1]} : vector<8x192xf32> to vector<1x192xf32>
    %cst_22 = arith.constant dense<0.000000e+00> : vector<1x192xf32>
    %81 = tpu.matmul %79, %10, %cst_22 {dimension_numbers = #tpu.dot_dimension_numbers<[1], [0], [0], [1], [0, 0, 1, 1], [], []>} : vector<1x64xf32>, vector<64x192xf32>, vector<1x192xf32> -> vector<1x192xf32>
    %82 = arith.addf %81, %11 : vector<1x192xf32>
    %83 = vector.extract_strided_slice %80 {offsets = [0, 0], sizes = [1, 128], strides = [1, 1]} : vector<1x192xf32> to vector<1x128xf32>
    %84 = vector.extract_strided_slice %82 {offsets = [0, 0], sizes = [1, 128], strides = [1, 1]} : vector<1x192xf32> to vector<1x128xf32>
    %85 = arith.addf %83, %84 : vector<1x128xf32>
    %86 = arith.negf %85 : vector<1x128xf32>
    %87 = math.exp %86 : vector<1x128xf32>
    %cst_23 = arith.constant 1.000000e+00 : f32
    %88 = vector.broadcast %cst_23 : f32 to vector<1x128xf32>
    %89 = arith.addf %88, %87 : vector<1x128xf32>
    %90 = arith.divf %88, %89 : vector<1x128xf32>
    %91 = vector.extract_strided_slice %90 {offsets = [0, 0], sizes = [1, 64], strides = [1, 1]} : vector<1x128xf32> to vector<1x64xf32>
    %92 = vector.extract_strided_slice %90 {offsets = [0, 64], sizes = [1, 64], strides = [1, 1]} : vector<1x128xf32> to vector<1x64xf32>
    %93 = vector.extract_strided_slice %80 {offsets = [0, 128], sizes = [1, 64], strides = [1, 1]} : vector<1x192xf32> to vector<1x64xf32>
    %94 = vector.extract_strided_slice %82 {offsets = [0, 128], sizes = [1, 64], strides = [1, 1]} : vector<1x192xf32> to vector<1x64xf32>
    %95 = arith.mulf %91, %94 : vector<1x64xf32>
    %96 = arith.addf %93, %95 : vector<1x64xf32>
    %97 = math.tanh %96 : vector<1x64xf32>
    %98 = arith.subf %79, %97 : vector<1x64xf32>
    %99 = arith.mulf %92, %98 : vector<1x64xf32>
    %100 = arith.addf %97, %99 : vector<1x64xf32>
    %101 = vector.extract_strided_slice %16 {offsets = [4, 0], sizes = [1, 192], strides = [1, 1]} : vector<8x192xf32> to vector<1x192xf32>
    %cst_24 = arith.constant dense<0.000000e+00> : vector<1x192xf32>
    %102 = tpu.matmul %100, %10, %cst_24 {dimension_numbers = #tpu.dot_dimension_numbers<[1], [0], [0], [1], [0, 0, 1, 1], [], []>} : vector<1x64xf32>, vector<64x192xf32>, vector<1x192xf32> -> vector<1x192xf32>
    %103 = arith.addf %102, %11 : vector<1x192xf32>
    %104 = vector.extract_strided_slice %101 {offsets = [0, 0], sizes = [1, 128], strides = [1, 1]} : vector<1x192xf32> to vector<1x128xf32>
    %105 = vector.extract_strided_slice %103 {offsets = [0, 0], sizes = [1, 128], strides = [1, 1]} : vector<1x192xf32> to vector<1x128xf32>
    %106 = arith.addf %104, %105 : vector<1x128xf32>
    %107 = arith.negf %106 : vector<1x128xf32>
    %108 = math.exp %107 : vector<1x128xf32>
    %cst_25 = arith.constant 1.000000e+00 : f32
    %109 = vector.broadcast %cst_25 : f32 to vector<1x128xf32>
    %110 = arith.addf %109, %108 : vector<1x128xf32>
    %111 = arith.divf %109, %110 : vector<1x128xf32>
    %112 = vector.extract_strided_slice %111 {offsets = [0, 0], sizes = [1, 64], strides = [1, 1]} : vector<1x128xf32> to vector<1x64xf32>
    %113 = vector.extract_strided_slice %111 {offsets = [0, 64], sizes = [1, 64], strides = [1, 1]} : vector<1x128xf32> to vector<1x64xf32>
    %114 = vector.extract_strided_slice %101 {offsets = [0, 128], sizes = [1, 64], strides = [1, 1]} : vector<1x192xf32> to vector<1x64xf32>
    %115 = vector.extract_strided_slice %103 {offsets = [0, 128], sizes = [1, 64], strides = [1, 1]} : vector<1x192xf32> to vector<1x64xf32>
    %116 = arith.mulf %112, %115 : vector<1x64xf32>
    %117 = arith.addf %114, %116 : vector<1x64xf32>
    %118 = math.tanh %117 : vector<1x64xf32>
    %119 = arith.subf %100, %118 : vector<1x64xf32>
    %120 = arith.mulf %113, %119 : vector<1x64xf32>
    %121 = arith.addf %118, %120 : vector<1x64xf32>
    %122 = vector.extract_strided_slice %16 {offsets = [5, 0], sizes = [1, 192], strides = [1, 1]} : vector<8x192xf32> to vector<1x192xf32>
    %cst_26 = arith.constant dense<0.000000e+00> : vector<1x192xf32>
    %123 = tpu.matmul %121, %10, %cst_26 {dimension_numbers = #tpu.dot_dimension_numbers<[1], [0], [0], [1], [0, 0, 1, 1], [], []>} : vector<1x64xf32>, vector<64x192xf32>, vector<1x192xf32> -> vector<1x192xf32>
    %124 = arith.addf %123, %11 : vector<1x192xf32>
    %125 = vector.extract_strided_slice %122 {offsets = [0, 0], sizes = [1, 128], strides = [1, 1]} : vector<1x192xf32> to vector<1x128xf32>
    %126 = vector.extract_strided_slice %124 {offsets = [0, 0], sizes = [1, 128], strides = [1, 1]} : vector<1x192xf32> to vector<1x128xf32>
    %127 = arith.addf %125, %126 : vector<1x128xf32>
    %128 = arith.negf %127 : vector<1x128xf32>
    %129 = math.exp %128 : vector<1x128xf32>
    %cst_27 = arith.constant 1.000000e+00 : f32
    %130 = vector.broadcast %cst_27 : f32 to vector<1x128xf32>
    %131 = arith.addf %130, %129 : vector<1x128xf32>
    %132 = arith.divf %130, %131 : vector<1x128xf32>
    %133 = vector.extract_strided_slice %132 {offsets = [0, 0], sizes = [1, 64], strides = [1, 1]} : vector<1x128xf32> to vector<1x64xf32>
    %134 = vector.extract_strided_slice %132 {offsets = [0, 64], sizes = [1, 64], strides = [1, 1]} : vector<1x128xf32> to vector<1x64xf32>
    %135 = vector.extract_strided_slice %122 {offsets = [0, 128], sizes = [1, 64], strides = [1, 1]} : vector<1x192xf32> to vector<1x64xf32>
    %136 = vector.extract_strided_slice %124 {offsets = [0, 128], sizes = [1, 64], strides = [1, 1]} : vector<1x192xf32> to vector<1x64xf32>
    %137 = arith.mulf %133, %136 : vector<1x64xf32>
    %138 = arith.addf %135, %137 : vector<1x64xf32>
    %139 = math.tanh %138 : vector<1x64xf32>
    %140 = arith.subf %121, %139 : vector<1x64xf32>
    %141 = arith.mulf %134, %140 : vector<1x64xf32>
    %142 = arith.addf %139, %141 : vector<1x64xf32>
    %143 = vector.extract_strided_slice %16 {offsets = [6, 0], sizes = [1, 192], strides = [1, 1]} : vector<8x192xf32> to vector<1x192xf32>
    %cst_28 = arith.constant dense<0.000000e+00> : vector<1x192xf32>
    %144 = tpu.matmul %142, %10, %cst_28 {dimension_numbers = #tpu.dot_dimension_numbers<[1], [0], [0], [1], [0, 0, 1, 1], [], []>} : vector<1x64xf32>, vector<64x192xf32>, vector<1x192xf32> -> vector<1x192xf32>
    %145 = arith.addf %144, %11 : vector<1x192xf32>
    %146 = vector.extract_strided_slice %143 {offsets = [0, 0], sizes = [1, 128], strides = [1, 1]} : vector<1x192xf32> to vector<1x128xf32>
    %147 = vector.extract_strided_slice %145 {offsets = [0, 0], sizes = [1, 128], strides = [1, 1]} : vector<1x192xf32> to vector<1x128xf32>
    %148 = arith.addf %146, %147 : vector<1x128xf32>
    %149 = arith.negf %148 : vector<1x128xf32>
    %150 = math.exp %149 : vector<1x128xf32>
    %cst_29 = arith.constant 1.000000e+00 : f32
    %151 = vector.broadcast %cst_29 : f32 to vector<1x128xf32>
    %152 = arith.addf %151, %150 : vector<1x128xf32>
    %153 = arith.divf %151, %152 : vector<1x128xf32>
    %154 = vector.extract_strided_slice %153 {offsets = [0, 0], sizes = [1, 64], strides = [1, 1]} : vector<1x128xf32> to vector<1x64xf32>
    %155 = vector.extract_strided_slice %153 {offsets = [0, 64], sizes = [1, 64], strides = [1, 1]} : vector<1x128xf32> to vector<1x64xf32>
    %156 = vector.extract_strided_slice %143 {offsets = [0, 128], sizes = [1, 64], strides = [1, 1]} : vector<1x192xf32> to vector<1x64xf32>
    %157 = vector.extract_strided_slice %145 {offsets = [0, 128], sizes = [1, 64], strides = [1, 1]} : vector<1x192xf32> to vector<1x64xf32>
    %158 = arith.mulf %154, %157 : vector<1x64xf32>
    %159 = arith.addf %156, %158 : vector<1x64xf32>
    %160 = math.tanh %159 : vector<1x64xf32>
    %161 = arith.subf %142, %160 : vector<1x64xf32>
    %162 = arith.mulf %155, %161 : vector<1x64xf32>
    %163 = arith.addf %160, %162 : vector<1x64xf32>
    %164 = vector.extract_strided_slice %16 {offsets = [7, 0], sizes = [1, 192], strides = [1, 1]} : vector<8x192xf32> to vector<1x192xf32>
    %cst_30 = arith.constant dense<0.000000e+00> : vector<1x192xf32>
    %165 = tpu.matmul %163, %10, %cst_30 {dimension_numbers = #tpu.dot_dimension_numbers<[1], [0], [0], [1], [0, 0, 1, 1], [], []>} : vector<1x64xf32>, vector<64x192xf32>, vector<1x192xf32> -> vector<1x192xf32>
    %166 = arith.addf %165, %11 : vector<1x192xf32>
    %167 = vector.extract_strided_slice %164 {offsets = [0, 0], sizes = [1, 128], strides = [1, 1]} : vector<1x192xf32> to vector<1x128xf32>
    %168 = vector.extract_strided_slice %166 {offsets = [0, 0], sizes = [1, 128], strides = [1, 1]} : vector<1x192xf32> to vector<1x128xf32>
    %169 = arith.addf %167, %168 : vector<1x128xf32>
    %170 = arith.negf %169 : vector<1x128xf32>
    %171 = math.exp %170 : vector<1x128xf32>
    %cst_31 = arith.constant 1.000000e+00 : f32
    %172 = vector.broadcast %cst_31 : f32 to vector<1x128xf32>
    %173 = arith.addf %172, %171 : vector<1x128xf32>
    %174 = arith.divf %172, %173 : vector<1x128xf32>
    %175 = vector.extract_strided_slice %174 {offsets = [0, 0], sizes = [1, 64], strides = [1, 1]} : vector<1x128xf32> to vector<1x64xf32>
    %176 = vector.extract_strided_slice %174 {offsets = [0, 64], sizes = [1, 64], strides = [1, 1]} : vector<1x128xf32> to vector<1x64xf32>
    %177 = vector.extract_strided_slice %164 {offsets = [0, 128], sizes = [1, 64], strides = [1, 1]} : vector<1x192xf32> to vector<1x64xf32>
    %178 = vector.extract_strided_slice %166 {offsets = [0, 128], sizes = [1, 64], strides = [1, 1]} : vector<1x192xf32> to vector<1x64xf32>
    %179 = arith.mulf %175, %178 : vector<1x64xf32>
    %180 = arith.addf %177, %179 : vector<1x64xf32>
    %181 = math.tanh %180 : vector<1x64xf32>
    %182 = arith.subf %163, %181 : vector<1x64xf32>
    %183 = arith.mulf %176, %182 : vector<1x64xf32>
    %184 = arith.addf %181, %183 : vector<1x64xf32>
    %185 = tpu.concatenate %37, %58, %79, %100, %121, %142, %163, %184 in 0 : vector<1x64xf32>, vector<1x64xf32>, vector<1x64xf32>, vector<1x64xf32>, vector<1x64xf32>, vector<1x64xf32>, vector<1x64xf32>, vector<1x64xf32> -> vector<8x64xf32>
    %186 = arith.index_cast %14 : i32 to index
    %c0_32 = arith.constant 0 : index
    %187 = vector.load %arg11[%186, %c0_32] : memref<8x64xf32, #tpu.memory_space<vmem>>, vector<8x64xf32>
    tpu.vector_store %arg11[%186, %c0_32], %185 {strides = array<i32>} : memref<8x64xf32, #tpu.memory_space<vmem>>, vector<8x64xf32>,
    %c1_i32 = arith.constant 1 : i32
    %c0_33 = arith.constant 0 : index
    %c0_34 = arith.constant 0 : index
    %188 = vector.load %arg12[%c0_33, %c0_34] : memref<1x64xf32, #tpu.memory_space<vmem>>, vector<1x64xf32>
    tpu.vector_store %arg12[%c0_33, %c0_34], %184 {strides = array<i32>} : memref<1x64xf32, #tpu.memory_space<vmem>>, vector<1x64xf32>,
    %c0_35 = arith.constant 0 : index
    %c0_36 = arith.constant 0 : index
    %189 = vector.load %arg9[%c0_35, %c0_36] : memref<1x64xf32, #tpu.memory_space<vmem>>, vector<1x64xf32>
    tpu.vector_store %arg9[%c0_35, %c0_36], %184 {strides = array<i32>} : memref<1x64xf32, #tpu.memory_space<vmem>>, vector<1x64xf32>,
    %c0_i32_37 = arith.constant 0 : i32
    %190 = arith.cmpi eq, %arg0, %c0_i32_37 : i32
    %191 = arith.extui %190 : i1 to i32
    %c0_i32_38 = arith.constant 0 : i32
    %192 = arith.cmpi ne, %191, %c0_i32_38 : i32
    scf.if %192 {
      %c0_46 = arith.constant 0 : index
      %c0_47 = arith.constant 0 : index
      %197 = vector.load %arg11[%c0_46, %c0_47] : memref<8x64xf32, #tpu.memory_space<vmem>>, vector<1x64xf32>
      %c0_48 = arith.constant 0 : index
      %c0_49 = arith.constant 0 : index
      %198 = vector.load %arg9[%c0_48, %c0_49] : memref<1x64xf32, #tpu.memory_space<vmem>>, vector<1x64xf32>
      tpu.vector_store %arg9[%c0_48, %c0_49], %197 {strides = array<i32>} : memref<1x64xf32, #tpu.memory_space<vmem>>, vector<1x64xf32>,
    } else {
    }
    %c0_39 = arith.constant 0 : index
    %c0_40 = arith.constant 0 : index
    %193 = vector.load %arg11[%c0_39, %c0_40] : memref<8x64xf32, #tpu.memory_space<vmem>>, vector<8x64xf32>
    %c0_41 = arith.constant 0 : index
    %c0_42 = arith.constant 0 : index
    %194 = vector.load %arg7[%c0_41, %c0_42] : memref<64x64xf32, #tpu.memory_space<vmem>>, vector<64x64xf32>
    %cst_43 = arith.constant dense<0.000000e+00> : vector<8x64xf32>
    %195 = tpu.matmul %193, %194, %cst_43 {dimension_numbers = #tpu.dot_dimension_numbers<[1], [0], [0], [1], [0, 0, 1, 1], [], []>} : vector<8x64xf32>, vector<64x64xf32>, vector<8x64xf32> -> vector<8x64xf32>
    %c0_44 = arith.constant 0 : index
    %c0_45 = arith.constant 0 : index
    %196 = vector.load %arg8[%c0_44, %c0_45] : memref<8x64xf32, #tpu.memory_space<vmem>>, vector<8x64xf32>
    tpu.vector_store %arg8[%c0_44, %c0_45], %195 {strides = array<i32>} : memref<8x64xf32, #tpu.memory_space<vmem>>, vector<8x64xf32>,
    return
  }
  func.func @transform_0(%arg0: i32) -> (i32, i32) {
    %c0_i32 = arith.constant 0 : i32
    %c0_i32_0 = arith.constant 0 : i32
    return %arg0, %c0_i32 : i32, i32
  }
  func.func @transform_1(%arg0: i32) -> (i32, i32) {
    %c0_i32 = arith.constant 0 : i32
    %c0_i32_0 = arith.constant 0 : i32
    %c0_i32_1 = arith.constant 0 : i32
    return %c0_i32, %c0_i32_0 : i32, i32
  }
  func.func @transform_2(%arg0: i32) -> (i32, i32) {
    %c0_i32 = arith.constant 0 : i32
    %c0_i32_0 = arith.constant 0 : i32
    %c0_i32_1 = arith.constant 0 : i32
    return %c0_i32, %c0_i32_0 : i32, i32
  }
  func.func @transform_3(%arg0: i32) -> (i32, i32) {
    %c0_i32 = arith.constant 0 : i32
    %c0_i32_0 = arith.constant 0 : i32
    %c0_i32_1 = arith.constant 0 : i32
    return %c0_i32, %c0_i32_0 : i32, i32
  }
  func.func @transform_4(%arg0: i32) -> (i32, i32) {
    %c0_i32 = arith.constant 0 : i32
    %c0_i32_0 = arith.constant 0 : i32
    %c0_i32_1 = arith.constant 0 : i32
    return %c0_i32, %c0_i32_0 : i32, i32
  }
  func.func @transform_5(%arg0: i32) -> (i32, i32) {
    %c0_i32 = arith.constant 0 : i32
    %c0_i32_0 = arith.constant 0 : i32
    %c0_i32_1 = arith.constant 0 : i32
    return %c0_i32, %c0_i32_0 : i32, i32
  }
  func.func @transform_6(%arg0: i32) -> (i32, i32) {
    %c0_i32 = arith.constant 0 : i32
    %c0_i32_0 = arith.constant 0 : i32
    %c0_i32_1 = arith.constant 0 : i32
    return %c0_i32, %c0_i32_0 : i32, i32
  }
  func.func @transform_7(%arg0: i32) -> (i32, i32) {
    %c0_i32 = arith.constant 0 : i32
    %c0_i32_0 = arith.constant 0 : i32
    return %arg0, %c0_i32 : i32, i32
  }
  func.func @transform_8(%arg0: i32) -> (i32, i32) {
    %c0_i32 = arith.constant 0 : i32
    %c0_i32_0 = arith.constant 0 : i32
    %c0_i32_1 = arith.constant 0 : i32
    return %c0_i32, %c0_i32_0 : i32, i32
  }
}

</mosaic_0001>

<llo_original>
// kernel: tpu_custom_call.1
$region0: #{tpu_custom_call.1}
  #allocation0 [shape = 'u32[]', space=smem, size = 0x4, offset = 0x4, fixed_abs, tag = 'smem constant byte address 0x4 - core index']
  #allocation1 [shape = 'u32[72,128]{1,0:T(1,128)}', space=vmem, size = 0x9000, scoped, tag = 'internal scratch']
  #allocation2 [shape = 'f32[8,192]{1,0:T(8,128)}', space=vmem, size = 0x2000, scoped, tag = 'scratch operand']
  #allocation3 [shape = 'f32[8,64]{1,0:T(8,128)}', space=vmem, size = 0x1000, scoped, tag = 'scratch operand']
  #allocation4 [shape = 'f32[1,64]{1,0:T(1,128)}', space=vmem, size = 0x200, scoped, tag = 'scratch operand']
  %s0 = inlined_call_operand.hbm [shape: f32[8,64], index: 0, kind: input, shape index: {}]
  %s1 = inlined_call_operand.hbm [shape: f32[64,192], index: 1, kind: input, shape index: {}]
  %s2 = inlined_call_operand.hbm [shape: f32[1,192], index: 2, kind: input, shape index: {}]
  %s3 = inlined_call_operand.hbm [shape: f32[64,192], index: 3, kind: input, shape index: {}]
  %s4 = inlined_call_operand.vmem [shape: f32[1,192], index: 4, kind: input, shape index: {}]
  %s5 = inlined_call_operand.vmem [shape: f32[1,64], index: 5, kind: input, shape index: {}]
  %s6 = inlined_call_operand.hbm [shape: f32[64,64], index: 6, kind: input, shape index: {}]
  %s7 = inlined_call_operand.hbm [shape: f32[8,64], index: 7, kind: output, shape index: {0}]
  %s8 = inlined_call_operand.hbm [shape: f32[1,64], index: 8, kind: output, shape index: {1}]
  %9 = xla_tuple %s7, %s8
  %s10 = sld [smem:[#allocation0]]
  $region74: #{tpu_custom_call.1} parent=0
    _
  %s12 = ssub.s32 1, %s10
  %s13 = scalar_select 0, %s12, %s10
  $region1: #{tpu_custom_call.1} parent=0
    #allocation5 [shape = 'u8[4096]{0}', space=vmem, size = 0x1000, scoped, tag = 'input window, operand 0, single buffered']
    #allocation6 [shape = 's32[1]{0}', space=sflag, size = 0x4, scoped, tag = 'scoped memory for tpu_custom_call.1']
    #allocation7 [shape = 's32[1]{0}', space=sflag, size = 0x4, scoped, tag = 'scoped memory for tpu_custom_call.1']
    #allocation8 [shape = 'u8[65536]{0}', space=vmem, size = 0x10000, scoped, tag = 'input window, operand 1, single buffered']
    #allocation9 [shape = 's32[1]{0}', space=sflag, size = 0x4, scoped, tag = 'scoped memory for tpu_custom_call.1']
    #allocation10 [shape = 'u8[1024]{0}', space=vmem, size = 0x400, scoped, tag = 'input window, operand 2, single buffered']
    #allocation11 [shape = 'u8[65536]{0}', space=vmem, size = 0x10000, scoped, tag = 'input window, operand 3, single buffered']
    #allocation12 [shape = 's32[1]{0}', space=sflag, size = 0x4, scoped, tag = 'scoped memory for tpu_custom_call.1']
    #allocation13 [shape = 'u8[32768]{0}', space=vmem, size = 0x8000, scoped, tag = 'input window, operand 6, single buffered']
    #allocation14 [shape = 'u8[4096]{0}', space=vmem, size = 0x1000, scoped, tag = 'output window, operand 0, single buffered']
    #allocation15 [shape = 'u8[512]{0}', space=vmem, size = 0x400, scoped, tag = 'output window, operand 1, single buffered']
    #allocation16 [shape = 's32[1]{0}', space=sflag, size = 0x4, scoped, tag = 'scoped memory for tpu_custom_call.1']
    %14 = vsyncpa [#allocation6], 0
    %15 = vsyncpa [#allocation9], 0
    %16 = vsyncpa [#allocation12], 0
    %17 = vsyncpa [#allocation7], 0
    %18 = vsyncpa [#allocation16], 0
    // Predicated region
    $region2: #{tpu_custom_call.1} parent=1 // pred_check
      _
    $region3: #{tpu_custom_call.1} parent=1 // pred_check_branch
      %20 = sbr.rel (0) target = $region5
    $region4: #{tpu_custom_call.1} parent=1 // pred_region
      %22 = vsyncadd [#allocation6], 0
      %s24 = sshll.u32 %s0, 4
      %s25 = int_to_ptr.hbm [resolvable:$true] %s24
      %s26 = sshll.u32 [#allocation5], 4
      %s27 = int_to_ptr.vmem [resolvable:$true] %s26
      %29 = dma.hbm_to_vmem [thread:$0]  %s25, 128, %s27, [#allocation6]
    $region5: #{tpu_custom_call.1} parent=1 // pred_fallthru
      _
    // Predicated region
    $region6: #{tpu_custom_call.1} parent=1 // pred_check
      _
    $region7: #{tpu_custom_call.1} parent=1 // pred_check_branch
      %31 = sbr.rel (0) target = $region9
    $region8: #{tpu_custom_call.1} parent=1 // pred_region
      %33 = vsyncadd [#allocation9], 0
      %s34 = sshll.u32 %s1, 4
      %s35 = int_to_ptr.hbm [resolvable:$true] %s34
      %s36 = sshll.u32 [#allocation8], 4
      %s37 = int_to_ptr.vmem [resolvable:$true] %s36
      %42 = dma.hbm_to_vmem [thread:$0]  %s35, 2048, %s37, [#allocation9], 256, 256, 16
    $region9: #{tpu_custom_call.1} parent=1 // pred_fallthru
      _
    // Predicated region
    $region10: #{tpu_custom_call.1} parent=1 // pred_check
      _
    $region11: #{tpu_custom_call.1} parent=1 // pred_check_branch
      %44 = sbr.rel (0) target = $region13
    $region12: #{tpu_custom_call.1} parent=1 // pred_region
      %46 = vsyncadd [#allocation9], 0
      %s48 = sshll.u32 %s2, 4
      %s49 = int_to_ptr.hbm [resolvable:$true] %s48
      %s50 = sshll.u32 [#allocation10], 4
      %s51 = int_to_ptr.vmem [resolvable:$true] %s50
      %53 = dma.hbm_to_vmem [thread:$0]  %s49, 32, %s51, [#allocation9]
    $region13: #{tpu_custom_call.1} parent=1 // pred_fallthru
      _
    // Predicated region
    $region14: #{tpu_custom_call.1} parent=1 // pred_check
      _
    $region15: #{tpu_custom_call.1} parent=1 // pred_check_branch
      %55 = sbr.rel (0) target = $region17
    $region16: #{tpu_custom_call.1} parent=1 // pred_region
      %57 = vsyncadd [#allocation12], 0
      %s58 = sshll.u32 %s3, 4
      %s59 = int_to_ptr.hbm [resolvable:$true] %s58
      %s60 = sshll.u32 [#allocation11], 4
      %s61 = int_to_ptr.vmem [resolvable:$true] %s60
      %66 = dma.hbm_to_vmem [thread:$0]  %s59, 2048, %s61, [#allocation12], 256, 256, 16
    $region17: #{tpu_custom_call.1} parent=1 // pred_fallthru
      _
    // Predicated region
    $region18: #{tpu_custom_call.1} parent=1 // pred_check
      _
    $region19: #{tpu_custom_call.1} parent=1 // pred_check_branch
      %68 = sbr.rel (0) target = $region21
    $region20: #{tpu_custom_call.1} parent=1 // pred_region
      _
    $region21: #{tpu_custom_call.1} parent=1 // pred_fallthru
      _
    // Predicated region
    $region22: #{tpu_custom_call.1} parent=1 // pred_check
      _
    $region23: #{tpu_custom_call.1} parent=1 // pred_check_branch
      %70 = sbr.rel (0) target = $region25
    $region24: #{tpu_custom_call.1} parent=1 // pred_region
      _
    $region25: #{tpu_custom_call.1} parent=1 // pred_fallthru
      _
    // Predicated region
    $region26: #{tpu_custom_call.1} parent=1 // pred_check
      _
    $region27: #{tpu_custom_call.1} parent=1 // pred_check_branch
      %72 = sbr.rel (0) target = $region29
    $region28: #{tpu_custom_call.1} parent=1 // pred_region
      %74 = vsyncadd [#allocation12], 0
      %s75 = sshll.u32 %s6, 4
      %s76 = int_to_ptr.hbm [resolvable:$true] %s75
      %s77 = sshll.u32 [#allocation13], 4
      %s78 = int_to_ptr.vmem [resolvable:$true] %s77
      %83 = dma.hbm_to_vmem [thread:$0]  %s76, 1024, %s78, [#allocation12], 128, 128, 8
    $region29: #{tpu_custom_call.1} parent=1 // pred_fallthru
      _
    // Predicated region
    $region30: #{tpu_custom_call.1} parent=1 // pred_check
      _
    $region31: #{tpu_custom_call.1} parent=1 // pred_check_branch
      %85 = sbr.rel (0) target = $region33
    $region32: #{tpu_custom_call.1} parent=1 // pred_region
      %87 = dma.done [#allocation6], 128
    $region33: #{tpu_custom_call.1} parent=1 // pred_fallthru
      _
    // Predicated region
    $region34: #{tpu_custom_call.1} parent=1 // pred_check
      _
    $region35: #{tpu_custom_call.1} parent=1 // pred_check_branch
      %89 = sbr.rel (0) target = $region37
    $region36: #{tpu_custom_call.1} parent=1 // pred_region
      %91 = dma.done [#allocation9], 2048
    $region37: #{tpu_custom_call.1} parent=1 // pred_fallthru
      _
    // Predicated region
    $region38: #{tpu_custom_call.1} parent=1 // pred_check
      _
    $region39: #{tpu_custom_call.1} parent=1 // pred_check_branch
      %93 = sbr.rel (0) target = $region41
    $region40: #{tpu_custom_call.1} parent=1 // pred_region
      %95 = dma.done [#allocation9], 32
    $region41: #{tpu_custom_call.1} parent=1 // pred_fallthru
      _
    // Predicated region
    $region42: #{tpu_custom_call.1} parent=1 // pred_check
      _
    $region43: #{tpu_custom_call.1} parent=1 // pred_check_branch
      %97 = sbr.rel (0) target = $region45
    $region44: #{tpu_custom_call.1} parent=1 // pred_region
      %99 = dma.done [#allocation12], 2048
    $region45: #{tpu_custom_call.1} parent=1 // pred_fallthru
      _
    // Predicated region
    $region46: #{tpu_custom_call.1} parent=1 // pred_check
      _
    $region47: #{tpu_custom_call.1} parent=1 // pred_check_branch
      %101 = sbr.rel (0) target = $region49
    $region48: #{tpu_custom_call.1} parent=1 // pred_region
      %103 = dma.done [#allocation12], 1024
    $region49: #{tpu_custom_call.1} parent=1 // pred_fallthru
      _
    %p104 = scmp.eq.s32.totalorder 0, 0
    // Predicated region
    $region50: #{tpu_custom_call.1} parent=1 // pred_check
      %p105 = pneg %p104
    $region51: #{tpu_custom_call.1} parent=1 // pred_check_branch
      %107 = sbr.rel (%p105) target = $region53
    $region52: #{tpu_custom_call.1} parent=1 // pred_region
      %v108 = vld [vmem:[%s5] sm:$0x1]
      %vm109 = vcmask 516096
      %110 = vst.msk [vmem:[#allocation4] sm:$0x1] %vm109, %v108
    $region53: #{tpu_custom_call.1} parent=1 // pred_fallthru
      _
    %v111 = vld [vmem:[#allocation5] sm:$0xff]
    %v112 = vld [vmem:[#allocation8] sm:$0xff]
    %v113 = vld [vmem:[#allocation8 + $0x8] sm:$0xff]
    %v114 = vld [vmem:[#allocation8 + $0x10] sm:$0xff]
    %v115 = vld [vmem:[#allocation8 + $0x18] sm:$0xff]
    %v116 = vld [vmem:[#allocation8 + $0x20] sm:$0xff]
    %v117 = vld [vmem:[#allocation8 + $0x28] sm:$0xff]
    %v118 = vld [vmem:[#allocation8 + $0x30] sm:$0xff]
    %v119 = vld [vmem:[#allocation8 + $0x38] sm:$0xff]
    %v120 = vld [vmem:[#allocation8 + $0x40] sm:$0xff]
    %v121 = vld [vmem:[#allocation8 + $0x48] sm:$0xff]
    %v122 = vld [vmem:[#allocation8 + $0x50] sm:$0xff]
    %v123 = vld [vmem:[#allocation8 + $0x58] sm:$0xff]
    %v124 = vld [vmem:[#allocation8 + $0x60] sm:$0xff]
    %v125 = vld [vmem:[#allocation8 + $0x68] sm:$0xff]
    %v126 = vld [vmem:[#allocation8 + $0x70] sm:$0xff]
    %v127 = vld [vmem:[#allocation8 + $0x78] sm:$0xff]
    %v128 = vld [vmem:[#allocation10] sm:$0x3]
    %v130 = vperm.slane %v128, 0
    %v131 = vperm.slane %v128, 1
    %vm134 = vcmask 523264
    %v136 = vsel %vm134, %v111, 0
    %138 = vmatpush.msra.mxu0 0.0
    %139 = vmatpush.msra.mxu0 0.0
    %140 = vmatpush.msra.mxu0 0.0
    %141 = vmatpush.msra.mxu0 0.0
    %142 = vmatpush.msra.mxu0 0.0
    %143 = vmatpush.msra.mxu0 0.0
    %144 = vmatpush.msra.mxu0 0.0
    %145 = vmatpush.msra.mxu0 0.0
    %146 = vmatpush.msra.mxu0 %v126
    %147 = vmatpush.msra.mxu0 %v124
    %148 = vmatpush.msra.mxu0 %v122
    %149 = vmatpush.msra.mxu0 %v120
    %150 = vmatpush.msra.mxu0 %v118
    %151 = vmatpush.msra.mxu0 %v116
    %152 = vmatpush.msra.mxu0 %v114
    %153 = vmatpush.msra.mxu0 %v112
    %154 = vmatmul.f32.gmra.mxu0 %v136
    %v155 = vpop.f32.mrf.mxu0
    %v156 = vadd.f32 %v130, %v155
    %157 = vdwg.mxu0
    %158 = vmatpush.msra.mxu0 0.0
    %159 = vmatpush.msra.mxu0 0.0
    %160 = vmatpush.msra.mxu0 0.0
    %161 = vmatpush.msra.mxu0 0.0
    %162 = vmatpush.msra.mxu0 0.0
    %163 = vmatpush.msra.mxu0 0.0
    %164 = vmatpush.msra.mxu0 0.0
    %165 = vmatpush.msra.mxu0 0.0
    %166 = vmatpush.msra.mxu0 %v127
    %167 = vmatpush.msra.mxu0 %v125
    %168 = vmatpush.msra.mxu0 %v123
    %169 = vmatpush.msra.mxu0 %v121
    %170 = vmatpush.msra.mxu0 %v119
    %171 = vmatpush.msra.mxu0 %v117
    %172 = vmatpush.msra.mxu0 %v115
    %173 = vmatpush.msra.mxu0 %v113
    %174 = vmatmul.f32.gmra.mxu0 %v136
    %v175 = vpop.f32.mrf.mxu0
    %v176 = vadd.f32 %v131, %v175
    %177 = vdwg.mxu0
    %178 = vst [vmem:[#allocation2] sm:$0xff] %v156
    %179 = vst.msk [vmem:[#allocation2 + $0x8] sm:$0xff] %vm134, %v176
    %v180 = vld [vmem:[#allocation11] sm:$0xff]
    %v181 = vld [vmem:[#allocation11 + $0x8] sm:$0xff]
    %v182 = vld [vmem:[#allocation11 + $0x10] sm:$0xff]
    %v183 = vld [vmem:[#allocation11 + $0x18] sm:$0xff]
    %v184 = vld [vmem:[#allocation11 + $0x20] sm:$0xff]
    %v185 = vld [vmem:[#allocation11 + $0x28] sm:$0xff]
    %v186 = vld [vmem:[#allocation11 + $0x30] sm:$0xff]
    %v187 = vld [vmem:[#allocation11 + $0x38] sm:$0xff]
    %v188 = vld [vmem:[#allocation11 + $0x40] sm:$0xff]
    %v189 = vld [vmem:[#allocation11 + $0x48] sm:$0xff]
    %v190 = vld [vmem:[#allocation11 + $0x50] sm:$0xff]
    %v191 = vld [vmem:[#allocation11 + $0x58] sm:$0xff]
    %v192 = vld [vmem:[#allocation11 + $0x60] sm:$0xff]
    %v193 = vld [vmem:[#allocation11 + $0x68] sm:$0xff]
    %v194 = vld [vmem:[#allocation11 + $0x70] sm:$0xff]
    %v195 = vld [vmem:[#allocation11 + $0x78] sm:$0xff]
    %v196 = vld [vmem:[%s4] sm:$0x3]
    %v197 = vld [vmem:[#allocation4] sm:$0x1]
    %s198 = smul.u32 0, 2
    %s199 = smul.addr %s198, 8
    %s200 = scalar_lea.vmem [#allocation2], %s199
    %v201 = vld [vmem:[%s200] sm:$0xff]
    %v202 = vld [vmem:[%s200 + $0x8] sm:$0xff]
    %v204 = vperm.slane %v196, 0
    %v205 = vperm.slane %v196, 1
    %v209 = vsel %vm134, %v197, 0
    %211 = vmatpush.msra.mxu0 0.0
    %212 = vmatpush.msra.mxu0 0.0
    %213 = vmatpush.msra.mxu0 0.0
    %214 = vmatpush.msra.mxu0 0.0
    %215 = vmatpush.msra.mxu0 0.0
    %216 = vmatpush.msra.mxu0 0.0
    %217 = vmatpush.msra.mxu0 0.0
    %218 = vmatpush.msra.mxu0 0.0
    %219 = vmatpush.msra.mxu0 %v194
    %220 = vmatpush.msra.mxu0 %v192
    %221 = vmatpush.msra.mxu0 %v190
    %222 = vmatpush.msra.mxu0 %v188
    %223 = vmatpush.msra.mxu0 %v186
    %224 = vmatpush.msra.mxu0 %v184
    %225 = vmatpush.msra.mxu0 %v182
    %226 = vmatpush.msra.mxu0 %v180
    %227 = vmatmul.f32.gmra.mxu0 %v209
    %v228 = vpop.f32.mrf.mxu0
    %v229 = vadd.f32 %v204, %v228
    %230 = vdwg.mxu0
    %231 = vmatpush.msra.mxu0 0.0
    %232 = vmatpush.msra.mxu0 0.0
    %233 = vmatpush.msra.mxu0 0.0
    %234 = vmatpush.msra.mxu0 0.0
    %235 = vmatpush.msra.mxu0 0.0
    %236 = vmatpush.msra.mxu0 0.0
    %237 = vmatpush.msra.mxu0 0.0
    %238 = vmatpush.msra.mxu0 0.0
    %239 = vmatpush.msra.mxu0 %v195
    %240 = vmatpush.msra.mxu0 %v193
    %241 = vmatpush.msra.mxu0 %v191
    %242 = vmatpush.msra.mxu0 %v189
    %243 = vmatpush.msra.mxu0 %v187
    %244 = vmatpush.msra.mxu0 %v185
    %245 = vmatpush.msra.mxu0 %v183
    %246 = vmatpush.msra.mxu0 %v181
    %247 = vmatmul.f32.gmra.mxu0 %v209
    %v248 = vpop.f32.mrf.mxu0
    %v249 = vadd.f32 %v205, %v248
    %250 = vdwg.mxu0
    %v251 = vadd.f32 %v201, %v229
    %v252 = vxor.u32 %v251, 2147483648
    %v253 = vmul.f32 %v252, 1.442695
    %v254 = vpow.pop %v253
    %v255 = vadd.f32 %v254, 1.0
    %v256 = vrcp.pop %v255
    %v257 = vmul.f32 %v255, %v256
    %v258 = vsub.f32 1.0, %v257
    %v259 = vmul.f32 %v256, %v258
    %v260 = vadd.f32 %v256, %v259
    %vm261 = vweird.f32 %v255
    %vm262 = vweird.f32 %v256
    %vm263 = vmor %vm261, %vm262
    %v264 = vsel %vm263, %v256, %v260
    %v265 = vand.u32 2147483647, %v255
    %vm266 = vcmp.eq.f32.partialorder %v265, 8.507059e+37
    %v267 = vand.u32 %v255, 2147483648
    %v268 = vor.u32 1.1754944e-38, %v267
    %v269 = vsel %vm266, %v268, %v264
    %v270 = vmul.f32 1.0, %v269
    %v271 = vmul.f32 %v270, %v249
    %v272 = vadd.f32 %v202, %v271
    %v273 = vtanh.pop %v272
    %v274 = vsub.f32 %v197, %v273
    %v276 = vperm.slane %v274, 0
    %277 = vrot.lane.b32.xlu0 %v276, 64
    %v278 = vpop.permute.xlu0 %277
    %v280 = vmul.f32 %v270, %v278
    %282 = vrot.lane.b32.xlu0 %v280, 64
    %v283 = vpop.permute.xlu0 %282
    %v285 = vadd.f32 %v273, %v283
    %v287 = vsel %vm134, %v285, 0
    %289 = vmatpush.msra.mxu0 0.0
    %290 = vmatpush.msra.mxu0 0.0
    %291 = vmatpush.msra.mxu0 0.0
    %292 = vmatpush.msra.mxu0 0.0
    %293 = vmatpush.msra.mxu0 0.0
    %294 = vmatpush.msra.mxu0 0.0
    %295 = vmatpush.msra.mxu0 0.0
    %296 = vmatpush.msra.mxu0 0.0
    %297 = vmatpush.msra.mxu0 %v194
    %298 = vmatpush.msra.mxu0 %v192
    %299 = vmatpush.msra.mxu0 %v190
    %300 = vmatpush.msra.mxu0 %v188
    %301 = vmatpush.msra.mxu0 %v186
    %302 = vmatpush.msra.mxu0 %v184
    %303 = vmatpush.msra.mxu0 %v182
    %304 = vmatpush.msra.mxu0 %v180
    %305 = vmatmul.f32.gmra.mxu0 %v287
    %v306 = vpop.f32.mrf.mxu0
    %v307 = vadd.f32 %v204, %v306
    %308 = vdwg.mxu0
    %309 = vmatpush.msra.mxu0 0.0
    %310 = vmatpush.msra.mxu0 0.0
    %311 = vmatpush.msra.mxu0 0.0
    %312 = vmatpush.msra.mxu0 0.0
    %313 = vmatpush.msra.mxu0 0.0
    %314 = vmatpush.msra.mxu0 0.0
    %315 = vmatpush.msra.mxu0 0.0
    %316 = vmatpush.msra.mxu0 0.0
    %317 = vmatpush.msra.mxu0 %v195
    %318 = vmatpush.msra.mxu0 %v193
    %319 = vmatpush.msra.mxu0 %v191
    %320 = vmatpush.msra.mxu0 %v189
    %321 = vmatpush.msra.mxu0 %v187
    %322 = vmatpush.msra.mxu0 %v185
    %323 = vmatpush.msra.mxu0 %v183
    %324 = vmatpush.msra.mxu0 %v181
    %325 = vmatmul.f32.gmra.mxu0 %v287
    %v326 = vpop.f32.mrf.mxu0
    %v327 = vadd.f32 %v205, %v326
    %328 = vdwg.mxu0
    %v330 = vrot.slane %v307, 7
    %v332 = vadd.f32 %v201, %v330
    %v333 = vxor.u32 %v332, 2147483648
    %v334 = vmul.f32 %v333, 1.442695
    %v335 = vpow.pop %v334
    %v336 = vadd.f32 %v335, 1.0
    %v337 = vrcp.pop %v336
    %v338 = vmul.f32 %v336, %v337
    %v339 = vsub.f32 1.0, %v338
    %v340 = vmul.f32 %v337, %v339
    %v341 = vadd.f32 %v337, %v340
    %vm342 = vweird.f32 %v336
    %vm343 = vweird.f32 %v337
    %vm344 = vmor %vm342, %vm343
    %v345 = vsel %vm344, %v337, %v341
    %v346 = vand.u32 2147483647, %v336
    %vm347 = vcmp.eq.f32.partialorder %v346, 8.507059e+37
    %v348 = vand.u32 %v336, 2147483648
    %v349 = vor.u32 1.1754944e-38, %v348
    %v350 = vsel %vm347, %v349, %v345
    %v351 = vmul.f32 1.0, %v350
    %v353 = vrot.slane %v327, 7
    %v355 = vmul.f32 %v351, %v353
    %v356 = vadd.f32 %v202, %v355
    %v357 = vtanh.pop %v356
    %v359 = vrot.slane %v357, 1
    %v361 = vsub.f32 %v285, %v359
    %v363 = vrot.slane %v361, 7
    %364 = vrot.lane.b32.xlu0 %v363, 64
    %v365 = vpop.permute.xlu0 %364
    %v367 = vmul.f32 %v351, %v365
    %369 = vrot.lane.b32.xlu0 %v367, 64
    %v370 = vpop.permute.xlu0 %369
    %v372 = vadd.f32 %v357, %v370
    %v374 = vrot.slane %v372, 1
    %v375 = vsel %vm134, %v374, 0
    %377 = vmatpush.msra.mxu0 0.0
    %378 = vmatpush.msra.mxu0 0.0
    %379 = vmatpush.msra.mxu0 0.0
    %380 = vmatpush.msra.mxu0 0.0
    %381 = vmatpush.msra.mxu0 0.0
    %382 = vmatpush.msra.mxu0 0.0
    %383 = vmatpush.msra.mxu0 0.0
    %384 = vmatpush.msra.mxu0 0.0
    %385 = vmatpush.msra.mxu0 %v194
    %386 = vmatpush.msra.mxu0 %v192
    %387 = vmatpush.msra.mxu0 %v190
    %388 = vmatpush.msra.mxu0 %v188
    %389 = vmatpush.msra.mxu0 %v186
    %390 = vmatpush.msra.mxu0 %v184
    %391 = vmatpush.msra.mxu0 %v182
    %392 = vmatpush.msra.mxu0 %v180
    %393 = vmatmul.f32.gmra.mxu0 %v375
    %v394 = vpop.f32.mrf.mxu0
    %v395 = vadd.f32 %v204, %v394
    %396 = vdwg.mxu0
    %397 = vmatpush.msra.mxu0 0.0
    %398 = vmatpush.msra.mxu0 0.0
    %399 = vmatpush.msra.mxu0 0.0
    %400 = vmatpush.msra.mxu0 0.0
    %401 = vmatpush.msra.mxu0 0.0
    %402 = vmatpush.msra.mxu0 0.0
    %403 = vmatpush.msra.mxu0 0.0
    %404 = vmatpush.msra.mxu0 0.0
    %405 = vmatpush.msra.mxu0 %v195
    %406 = vmatpush.msra.mxu0 %v193
    %407 = vmatpush.msra.mxu0 %v191
    %408 = vmatpush.msra.mxu0 %v189
    %409 = vmatpush.msra.mxu0 %v187
    %410 = vmatpush.msra.mxu0 %v185
    %411 = vmatpush.msra.mxu0 %v183
    %412 = vmatpush.msra.mxu0 %v181
    %413 = vmatmul.f32.gmra.mxu0 %v375
    %v414 = vpop.f32.mrf.mxu0
    %v415 = vadd.f32 %v205, %v414
    %416 = vdwg.mxu0
    %v418 = vrot.slane %v395, 6
    %v420 = vadd.f32 %v201, %v418
    %v421 = vxor.u32 %v420, 2147483648
    %v422 = vmul.f32 %v421, 1.442695
    %v423 = vpow.pop %v422
    %v424 = vadd.f32 %v423, 1.0
    %v425 = vrcp.pop %v424
    %v426 = vmul.f32 %v424, %v425
    %v427 = vsub.f32 1.0, %v426
    %v428 = vmul.f32 %v425, %v427
    %v429 = vadd.f32 %v425, %v428
    %vm430 = vweird.f32 %v424
    %vm431 = vweird.f32 %v425
    %vm432 = vmor %vm430, %vm431
    %v433 = vsel %vm432, %v425, %v429
    %v434 = vand.u32 2147483647, %v424
    %vm435 = vcmp.eq.f32.partialorder %v434, 8.507059e+37
    %v436 = vand.u32 %v424, 2147483648
    %v437 = vor.u32 1.1754944e-38, %v436
    %v438 = vsel %vm435, %v437, %v433
    %v439 = vmul.f32 1.0, %v438
    %v441 = vrot.slane %v415, 6
    %v443 = vmul.f32 %v439, %v441
    %v444 = vadd.f32 %v202, %v443
    %v445 = vtanh.pop %v444
    %v447 = vrot.slane %v445, 1
    %v449 = vsub.f32 %v372, %v447
    %v451 = vrot.slane %v449, 7
    %452 = vrot.lane.b32.xlu0 %v451, 64
    %v453 = vpop.permute.xlu0 %452
    %v455 = vmul.f32 %v439, %v453
    %457 = vrot.lane.b32.xlu0 %v455, 64
    %v458 = vpop.permute.xlu0 %457
    %v460 = vadd.f32 %v445, %v458
    %v462 = vrot.slane %v460, 2
    %v463 = vsel %vm134, %v462, 0
    %465 = vmatpush.msra.mxu0 0.0
    %466 = vmatpush.msra.mxu0 0.0
    %467 = vmatpush.msra.mxu0 0.0
    %468 = vmatpush.msra.mxu0 0.0
    %469 = vmatpush.msra.mxu0 0.0
    %470 = vmatpush.msra.mxu0 0.0
    %471 = vmatpush.msra.mxu0 0.0
    %472 = vmatpush.msra.mxu0 0.0
    %473 = vmatpush.msra.mxu0 %v194
    %474 = vmatpush.msra.mxu0 %v192
    %475 = vmatpush.msra.mxu0 %v190
    %476 = vmatpush.msra.mxu0 %v188
    %477 = vmatpush.msra.mxu0 %v186
    %478 = vmatpush.msra.mxu0 %v184
    %479 = vmatpush.msra.mxu0 %v182
    %480 = vmatpush.msra.mxu0 %v180
    %481 = vmatmul.f32.gmra.mxu0 %v463
    %v482 = vpop.f32.mrf.mxu0
    %v483 = vadd.f32 %v204, %v482
    %484 = vdwg.mxu0
    %485 = vmatpush.msra.mxu0 0.0
    %486 = vmatpush.msra.mxu0 0.0
    %487 = vmatpush.msra.mxu0 0.0
    %488 = vmatpush.msra.mxu0 0.0
    %489 = vmatpush.msra.mxu0 0.0
    %490 = vmatpush.msra.mxu0 0.0
    %491 = vmatpush.msra.mxu0 0.0
    %492 = vmatpush.msra.mxu0 0.0
    %493 = vmatpush.msra.mxu0 %v195
    %494 = vmatpush.msra.mxu0 %v193
    %495 = vmatpush.msra.mxu0 %v191
    %496 = vmatpush.msra.mxu0 %v189
    %497 = vmatpush.msra.mxu0 %v187
    %498 = vmatpush.msra.mxu0 %v185
    %499 = vmatpush.msra.mxu0 %v183
    %500 = vmatpush.msra.mxu0 %v181
    %501 = vmatmul.f32.gmra.mxu0 %v463
    %v502 = vpop.f32.mrf.mxu0
    %v503 = vadd.f32 %v205, %v502
    %504 = vdwg.mxu0
    %v506 = vrot.slane %v483, 5
    %v508 = vadd.f32 %v201, %v506
    %v509 = vxor.u32 %v508, 2147483648
    %v510 = vmul.f32 %v509, 1.442695
    %v511 = vpow.pop %v510
    %v512 = vadd.f32 %v511, 1.0
    %v513 = vrcp.pop %v512
    %v514 = vmul.f32 %v512, %v513
    %v515 = vsub.f32 1.0, %v514
    %v516 = vmul.f32 %v513, %v515
    %v517 = vadd.f32 %v513, %v516
    %vm518 = vweird.f32 %v512
    %vm519 = vweird.f32 %v513
    %vm520 = vmor %vm518, %vm519
    %v521 = vsel %vm520, %v513, %v517
    %v522 = vand.u32 2147483647, %v512
    %vm523 = vcmp.eq.f32.partialorder %v522, 8.507059e+37
    %v524 = vand.u32 %v512, 2147483648
    %v525 = vor.u32 1.1754944e-38, %v524
    %v526 = vsel %vm523, %v525, %v521
    %v527 = vmul.f32 1.0, %v526
    %v529 = vrot.slane %v503, 5
    %v531 = vmul.f32 %v527, %v529
    %v532 = vadd.f32 %v202, %v531
    %v533 = vtanh.pop %v532
    %v535 = vrot.slane %v533, 1
    %v537 = vsub.f32 %v460, %v535
    %v539 = vrot.slane %v537, 7
    %540 = vrot.lane.b32.xlu0 %v539, 64
    %v541 = vpop.permute.xlu0 %540
    %v543 = vmul.f32 %v527, %v541
    %545 = vrot.lane.b32.xlu0 %v543, 64
    %v546 = vpop.permute.xlu0 %545
    %v548 = vadd.f32 %v533, %v546
    %v550 = vrot.slane %v548, 3
    %v551 = vsel %vm134, %v550, 0
    %553 = vmatpush.msra.mxu0 0.0
    %554 = vmatpush.msra.mxu0 0.0
    %555 = vmatpush.msra.mxu0 0.0
    %556 = vmatpush.msra.mxu0 0.0
    %557 = vmatpush.msra.mxu0 0.0
    %558 = vmatpush.msra.mxu0 0.0
    %559 = vmatpush.msra.mxu0 0.0
    %560 = vmatpush.msra.mxu0 0.0
    %561 = vmatpush.msra.mxu0 %v194
    %562 = vmatpush.msra.mxu0 %v192
    %563 = vmatpush.msra.mxu0 %v190
    %564 = vmatpush.msra.mxu0 %v188
    %565 = vmatpush.msra.mxu0 %v186
    %566 = vmatpush.msra.mxu0 %v184
    %567 = vmatpush.msra.mxu0 %v182
    %568 = vmatpush.msra.mxu0 %v180
    %569 = vmatmul.f32.gmra.mxu0 %v551
    %v570 = vpop.f32.mrf.mxu0
    %v571 = vadd.f32 %v204, %v570
    %572 = vdwg.mxu0
    %573 = vmatpush.msra.mxu0 0.0
    %574 = vmatpush.msra.mxu0 0.0
    %575 = vmatpush.msra.mxu0 0.0
    %576 = vmatpush.msra.mxu0 0.0
    %577 = vmatpush.msra.mxu0 0.0
    %578 = vmatpush.msra.mxu0 0.0
    %579 = vmatpush.msra.mxu0 0.0
    %580 = vmatpush.msra.mxu0 0.0
    %581 = vmatpush.msra.mxu0 %v195
    %582 = vmatpush.msra.mxu0 %v193
    %583 = vmatpush.msra.mxu0 %v191
    %584 = vmatpush.msra.mxu0 %v189
    %585 = vmatpush.msra.mxu0 %v187
    %586 = vmatpush.msra.mxu0 %v185
    %587 = vmatpush.msra.mxu0 %v183
    %588 = vmatpush.msra.mxu0 %v181
    %589 = vmatmul.f32.gmra.mxu0 %v551
    %v590 = vpop.f32.mrf.mxu0
    %v591 = vadd.f32 %v205, %v590
    %592 = vdwg.mxu0
    %v594 = vrot.slane %v571, 4
    %v596 = vadd.f32 %v201, %v594
    %v597 = vxor.u32 %v596, 2147483648
    %v598 = vmul.f32 %v597, 1.442695
    %v599 = vpow.pop %v598
    %v600 = vadd.f32 %v599, 1.0
    %v601 = vrcp.pop %v600
    %v602 = vmul.f32 %v600, %v601
    %v603 = vsub.f32 1.0, %v602
    %v604 = vmul.f32 %v601, %v603
    %v605 = vadd.f32 %v601, %v604
    %vm606 = vweird.f32 %v600
    %vm607 = vweird.f32 %v601
    %vm608 = vmor %vm606, %vm607
    %v609 = vsel %vm608, %v601, %v605
    %v610 = vand.u32 2147483647, %v600
    %vm611 = vcmp.eq.f32.partialorder %v610, 8.507059e+37
    %v612 = vand.u32 %v600, 2147483648
    %v613 = vor.u32 1.1754944e-38, %v612
    %v614 = vsel %vm611, %v613, %v609
    %v615 = vmul.f32 1.0, %v614
    %v617 = vrot.slane %v591, 4
    %v619 = vmul.f32 %v615, %v617
    %v620 = vadd.f32 %v202, %v619
    %v621 = vtanh.pop %v620
    %v623 = vrot.slane %v621, 1
    %v625 = vsub.f32 %v548, %v623
    %v627 = vrot.slane %v625, 7
    %628 = vrot.lane.b32.xlu0 %v627, 64
    %v629 = vpop.permute.xlu0 %628
    %v631 = vmul.f32 %v615, %v629
    %633 = vrot.lane.b32.xlu0 %v631, 64
    %v634 = vpop.permute.xlu0 %633
    %v636 = vadd.f32 %v621, %v634
    %v638 = vrot.slane %v636, 4
    %v639 = vsel %vm134, %v638, 0
    %641 = vmatpush.msra.mxu0 0.0
    %642 = vmatpush.msra.mxu0 0.0
    %643 = vmatpush.msra.mxu0 0.0
    %644 = vmatpush.msra.mxu0 0.0
    %645 = vmatpush.msra.mxu0 0.0
    %646 = vmatpush.msra.mxu0 0.0
    %647 = vmatpush.msra.mxu0 0.0
    %648 = vmatpush.msra.mxu0 0.0
    %649 = vmatpush.msra.mxu0 %v194
    %650 = vmatpush.msra.mxu0 %v192
    %651 = vmatpush.msra.mxu0 %v190
    %652 = vmatpush.msra.mxu0 %v188
    %653 = vmatpush.msra.mxu0 %v186
    %654 = vmatpush.msra.mxu0 %v184
    %655 = vmatpush.msra.mxu0 %v182
    %656 = vmatpush.msra.mxu0 %v180
    %657 = vmatmul.f32.gmra.mxu0 %v639
    %v658 = vpop.f32.mrf.mxu0
    %v659 = vadd.f32 %v204, %v658
    %660 = vdwg.mxu0
    %661 = vmatpush.msra.mxu0 0.0
    %662 = vmatpush.msra.mxu0 0.0
    %663 = vmatpush.msra.mxu0 0.0
    %664 = vmatpush.msra.mxu0 0.0
    %665 = vmatpush.msra.mxu0 0.0
    %666 = vmatpush.msra.mxu0 0.0
    %667 = vmatpush.msra.mxu0 0.0
    %668 = vmatpush.msra.mxu0 0.0
    %669 = vmatpush.msra.mxu0 %v195
    %670 = vmatpush.msra.mxu0 %v193
    %671 = vmatpush.msra.mxu0 %v191
    %672 = vmatpush.msra.mxu0 %v189
    %673 = vmatpush.msra.mxu0 %v187
    %674 = vmatpush.msra.mxu0 %v185
    %675 = vmatpush.msra.mxu0 %v183
    %676 = vmatpush.msra.mxu0 %v181
    %677 = vmatmul.f32.gmra.mxu0 %v639
    %v678 = vpop.f32.mrf.mxu0
    %v679 = vadd.f32 %v205, %v678
    %680 = vdwg.mxu0
    %v682 = vrot.slane %v659, 3
    %v684 = vadd.f32 %v201, %v682
    %v685 = vxor.u32 %v684, 2147483648
    %v686 = vmul.f32 %v685, 1.442695
    %v687 = vpow.pop %v686
    %v688 = vadd.f32 %v687, 1.0
    %v689 = vrcp.pop %v688
    %v690 = vmul.f32 %v688, %v689
    %v691 = vsub.f32 1.0, %v690
    %v692 = vmul.f32 %v689, %v691
    %v693 = vadd.f32 %v689, %v692
    %vm694 = vweird.f32 %v688
    %vm695 = vweird.f32 %v689
    %vm696 = vmor %vm694, %vm695
    %v697 = vsel %vm696, %v689, %v693
    %v698 = vand.u32 2147483647, %v688
    %vm699 = vcmp.eq.f32.partialorder %v698, 8.507059e+37
    %v700 = vand.u32 %v688, 2147483648
    %v701 = vor.u32 1.1754944e-38, %v700
    %v702 = vsel %vm699, %v701, %v697
    %v703 = vmul.f32 1.0, %v702
    %v705 = vrot.slane %v679, 3
    %v707 = vmul.f32 %v703, %v705
    %v708 = vadd.f32 %v202, %v707
    %v709 = vtanh.pop %v708
    %v711 = vrot.slane %v709, 1
    %v713 = vsub.f32 %v636, %v711
    %v715 = vrot.slane %v713, 7
    %716 = vrot.lane.b32.xlu0 %v715, 64
    %v717 = vpop.permute.xlu0 %716
    %v719 = vmul.f32 %v703, %v717
    %721 = vrot.lane.b32.xlu0 %v719, 64
    %v722 = vpop.permute.xlu0 %721
    %v724 = vadd.f32 %v709, %v722
    %v726 = vrot.slane %v724, 5
    %v727 = vsel %vm134, %v726, 0
    %729 = vmatpush.msra.mxu0 0.0
    %730 = vmatpush.msra.mxu0 0.0
    %731 = vmatpush.msra.mxu0 0.0
    %732 = vmatpush.msra.mxu0 0.0
    %733 = vmatpush.msra.mxu0 0.0
    %734 = vmatpush.msra.mxu0 0.0
    %735 = vmatpush.msra.mxu0 0.0
    %736 = vmatpush.msra.mxu0 0.0
    %737 = vmatpush.msra.mxu0 %v194
    %738 = vmatpush.msra.mxu0 %v192
    %739 = vmatpush.msra.mxu0 %v190
    %740 = vmatpush.msra.mxu0 %v188
    %741 = vmatpush.msra.mxu0 %v186
    %742 = vmatpush.msra.mxu0 %v184
    %743 = vmatpush.msra.mxu0 %v182
    %744 = vmatpush.msra.mxu0 %v180
    %745 = vmatmul.f32.gmra.mxu0 %v727
    %v746 = vpop.f32.mrf.mxu0
    %v747 = vadd.f32 %v204, %v746
    %748 = vdwg.mxu0
    %749 = vmatpush.msra.mxu0 0.0
    %750 = vmatpush.msra.mxu0 0.0
    %751 = vmatpush.msra.mxu0 0.0
    %752 = vmatpush.msra.mxu0 0.0
    %753 = vmatpush.msra.mxu0 0.0
    %754 = vmatpush.msra.mxu0 0.0
    %755 = vmatpush.msra.mxu0 0.0
    %756 = vmatpush.msra.mxu0 0.0
    %757 = vmatpush.msra.mxu0 %v195
    %758 = vmatpush.msra.mxu0 %v193
    %759 = vmatpush.msra.mxu0 %v191
    %760 = vmatpush.msra.mxu0 %v189
    %761 = vmatpush.msra.mxu0 %v187
    %762 = vmatpush.msra.mxu0 %v185
    %763 = vmatpush.msra.mxu0 %v183
    %764 = vmatpush.msra.mxu0 %v181
    %765 = vmatmul.f32.gmra.mxu0 %v727
    %v766 = vpop.f32.mrf.mxu0
    %v767 = vadd.f32 %v205, %v766
    %768 = vdwg.mxu0
    %v770 = vrot.slane %v747, 2
    %v772 = vadd.f32 %v201, %v770
    %v773 = vxor.u32 %v772, 2147483648
    %v774 = vmul.f32 %v773, 1.442695
    %v775 = vpow.pop %v774
    %v776 = vadd.f32 %v775, 1.0
    %v777 = vrcp.pop %v776
    %v778 = vmul.f32 %v776, %v777
    %v779 = vsub.f32 1.0, %v778
    %v780 = vmul.f32 %v777, %v779
    %v781 = vadd.f32 %v777, %v780
    %vm782 = vweird.f32 %v776
    %vm783 = vweird.f32 %v777
    %vm784 = vmor %vm782, %vm783
    %v785 = vsel %vm784, %v777, %v781
    %v786 = vand.u32 2147483647, %v776
    %vm787 = vcmp.eq.f32.partialorder %v786, 8.507059e+37
    %v788 = vand.u32 %v776, 2147483648
    %v789 = vor.u32 1.1754944e-38, %v788
    %v790 = vsel %vm787, %v789, %v785
    %v791 = vmul.f32 1.0, %v790
    %v793 = vrot.slane %v767, 2
    %v795 = vmul.f32 %v791, %v793
    %v796 = vadd.f32 %v202, %v795
    %v797 = vtanh.pop %v796
    %v799 = vrot.slane %v797, 1
    %v801 = vsub.f32 %v724, %v799
    %v803 = vrot.slane %v801, 7
    %804 = vrot.lane.b32.xlu0 %v803, 64
    %v805 = vpop.permute.xlu0 %804
    %v807 = vmul.f32 %v791, %v805
    %809 = vrot.lane.b32.xlu0 %v807, 64
    %v810 = vpop.permute.xlu0 %809
    %v812 = vadd.f32 %v797, %v810
    %v814 = vrot.slane %v812, 6
    %v815 = vsel %vm134, %v814, 0
    %817 = vmatpush.msra.mxu0 0.0
    %818 = vmatpush.msra.mxu0 0.0
    %819 = vmatpush.msra.mxu0 0.0
    %820 = vmatpush.msra.mxu0 0.0
    %821 = vmatpush.msra.mxu0 0.0
    %822 = vmatpush.msra.mxu0 0.0
    %823 = vmatpush.msra.mxu0 0.0
    %824 = vmatpush.msra.mxu0 0.0
    %825 = vmatpush.msra.mxu0 %v194
    %826 = vmatpush.msra.mxu0 %v192
    %827 = vmatpush.msra.mxu0 %v190
    %828 = vmatpush.msra.mxu0 %v188
    %829 = vmatpush.msra.mxu0 %v186
    %830 = vmatpush.msra.mxu0 %v184
    %831 = vmatpush.msra.mxu0 %v182
    %832 = vmatpush.msra.mxu0 %v180
    %833 = vmatmul.f32.gmra.mxu0 %v815
    %v834 = vpop.f32.mrf.mxu0
    %v835 = vadd.f32 %v204, %v834
    %836 = vdwg.mxu0
    %837 = vmatpush.msra.mxu0 0.0
    %838 = vmatpush.msra.mxu0 0.0
    %839 = vmatpush.msra.mxu0 0.0
    %840 = vmatpush.msra.mxu0 0.0
    %841 = vmatpush.msra.mxu0 0.0
    %842 = vmatpush.msra.mxu0 0.0
    %843 = vmatpush.msra.mxu0 0.0
    %844 = vmatpush.msra.mxu0 0.0
    %845 = vmatpush.msra.mxu0 %v195
    %846 = vmatpush.msra.mxu0 %v193
    %847 = vmatpush.msra.mxu0 %v191
    %848 = vmatpush.msra.mxu0 %v189
    %849 = vmatpush.msra.mxu0 %v187
    %850 = vmatpush.msra.mxu0 %v185
    %851 = vmatpush.msra.mxu0 %v183
    %852 = vmatpush.msra.mxu0 %v181
    %853 = vmatmul.f32.gmra.mxu0 %v815
    %v854 = vpop.f32.mrf.mxu0
    %v855 = vadd.f32 %v205, %v854
    %856 = vdwg.mxu0
    %v858 = vrot.slane %v835, 1
    %v860 = vadd.f32 %v201, %v858
    %v861 = vxor.u32 %v860, 2147483648
    %v862 = vmul.f32 %v861, 1.442695
    %v863 = vpow.pop %v862
    %v864 = vadd.f32 %v863, 1.0
    %v865 = vrcp.pop %v864
    %v866 = vmul.f32 %v864, %v865
    %v867 = vsub.f32 1.0, %v866
    %v868 = vmul.f32 %v865, %v867
    %v869 = vadd.f32 %v865, %v868
    %vm870 = vweird.f32 %v864
    %vm871 = vweird.f32 %v865
    %vm872 = vmor %vm870, %vm871
    %v873 = vsel %vm872, %v865, %v869
    %v874 = vand.u32 2147483647, %v864
    %vm875 = vcmp.eq.f32.partialorder %v874, 8.507059e+37
    %v876 = vand.u32 %v864, 2147483648
    %v877 = vor.u32 1.1754944e-38, %v876
    %v878 = vsel %vm875, %v877, %v873
    %v879 = vmul.f32 1.0, %v878
    %v881 = vrot.slane %v855, 1
    %v883 = vmul.f32 %v879, %v881
    %v884 = vadd.f32 %v202, %v883
    %v885 = vtanh.pop %v884
    %v887 = vrot.slane %v885, 1
    %v889 = vsub.f32 %v812, %v887
    %v891 = vrot.slane %v889, 7
    %892 = vrot.lane.b32.xlu0 %v891, 64
    %v893 = vpop.permute.xlu0 %892
    %v895 = vmul.f32 %v879, %v893
    %897 = vrot.lane.b32.xlu0 %v895, 64
    %v898 = vpop.permute.xlu0 %897
    %v900 = vadd.f32 %v885, %v898
    %vm901 = vcmask 1040384
    %v902 = vsel %vm901, %v285, %v372
    %vm903 = vcmask 1041408
    %v904 = vsel %vm903, %v902, %v460
    %vm905 = vcmask 1042432
    %v906 = vsel %vm905, %v904, %v548
    %vm907 = vcmask 1043456
    %v908 = vsel %vm907, %v906, %v636
    %vm909 = vcmask 1044480
    %v910 = vsel %vm909, %v908, %v724
    %vm911 = vcmask 1045504
    %v912 = vsel %vm911, %v910, %v812
    %vm913 = vcmask 1046528
    %v914 = vsel %vm913, %v912, %v900
    %915 = vst.msk [vmem:[#allocation3] sm:$0xff] %vm134, %v914
    %vm916 = vcmask 523271
    %917 = vst.msk [vmem:[#allocation4 - $0x7] sm:$0x80] %vm916, %v900
    %918 = vst.msk [vmem:[#allocation15 - $0x7] sm:$0x80] %vm916, %v900
    // Predicated region
    $region54: #{tpu_custom_call.1} parent=1 // pred_check
      %p919 = pneg %p104
    $region55: #{tpu_custom_call.1} parent=1 // pred_check_branch
      %921 = sbr.rel (%p919) target = $region57
    $region56: #{tpu_custom_call.1} parent=1 // pred_region
      %v922 = vld [vmem:[#allocation3] sm:$0x1]
      %vm923 = vcmask 516096
      %924 = vst.msk [vmem:[#allocation15] sm:$0x1] %vm923, %v922
    $region57: #{tpu_custom_call.1} parent=1 // pred_fallthru
      _
    %v925 = vld [vmem:[#allocation3] sm:$0xff]
    %v926 = vld [vmem:[#allocation13] sm:$0xff]
    %v927 = vld [vmem:[#allocation13 + $0x8] sm:$0xff]
    %v928 = vld [vmem:[#allocation13 + $0x10] sm:$0xff]
    %v929 = vld [vmem:[#allocation13 + $0x18] sm:$0xff]
    %v930 = vld [vmem:[#allocation13 + $0x20] sm:$0xff]
    %v931 = vld [vmem:[#allocation13 + $0x28] sm:$0xff]
    %v932 = vld [vmem:[#allocation13 + $0x30] sm:$0xff]
    %v933 = vld [vmem:[#allocation13 + $0x38] sm:$0xff]
    %v935 = vsel %vm134, %v925, 0
    %937 = vmatpush.msra.mxu0 0.0
    %938 = vmatpush.msra.mxu0 0.0
    %939 = vmatpush.msra.mxu0 0.0
    %940 = vmatpush.msra.mxu0 0.0
    %941 = vmatpush.msra.mxu0 0.0
    %942 = vmatpush.msra.mxu0 0.0
    %943 = vmatpush.msra.mxu0 0.0
    %944 = vmatpush.msra.mxu0 0.0
    %945 = vmatpush.msra.mxu0 %v933
    %946 = vmatpush.msra.mxu0 %v932
    %947 = vmatpush.msra.mxu0 %v931
    %948 = vmatpush.msra.mxu0 %v930
    %949 = vmatpush.msra.mxu0 %v929
    %950 = vmatpush.msra.mxu0 %v928
    %951 = vmatpush.msra.mxu0 %v927
    %952 = vmatpush.msra.mxu0 %v926
    %953 = vmatmul.f32.gmra.mxu0 %v935
    %v954 = vpop.f32.mrf.mxu0
    %v955 = vadd.f32 0.0, %v954
    %956 = vdwg.mxu0
    %957 = vst.msk [vmem:[#allocation14] sm:$0xff] %vm134, %v955
    // Predicated region
    $region58: #{tpu_custom_call.1} parent=1 // pred_check
      _
    $region59: #{tpu_custom_call.1} parent=1 // pred_check_branch
      %959 = sbr.rel (0) target = $region61
    $region60: #{tpu_custom_call.1} parent=1 // pred_region
      %961 = vsyncadd [#allocation7], 0
      %s963 = sshll.u32 [#allocation14], 4
      %s964 = int_to_ptr.vmem [resolvable:$true] %s963
      %s965 = sshll.u32 %s7, 4
      %s966 = int_to_ptr.hbm [resolvable:$true] %s965
      %968 = dma.vmem_to_hbm [thread:$0]  %s964, 128, %s966, [#allocation7]
    $region61: #{tpu_custom_call.1} parent=1 // pred_fallthru
      _
    // Predicated region
    $region62: #{tpu_custom_call.1} parent=1 // pred_check
      _
    $region63: #{tpu_custom_call.1} parent=1 // pred_check_branch
      %970 = sbr.rel (0) target = $region65
    $region64: #{tpu_custom_call.1} parent=1 // pred_region
      %972 = vsyncadd [#allocation16], 0
      %s974 = sshll.u32 [#allocation15], 4
      %s975 = int_to_ptr.vmem [resolvable:$true] %s974
      %s976 = sshll.u32 %s8, 4
      %s977 = int_to_ptr.hbm [resolvable:$true] %s976
      %979 = dma.vmem_to_hbm [thread:$0]  %s975, 16, %s977, [#allocation16]
    $region65: #{tpu_custom_call.1} parent=1 // pred_fallthru
      _
    // Predicated region
    $region66: #{tpu_custom_call.1} parent=1 // pred_check
      _
    $region67: #{tpu_custom_call.1} parent=1 // pred_check_branch
      %981 = sbr.rel (0) target = $region69
    $region68: #{tpu_custom_call.1} parent=1 // pred_region
      %983 = dma.done [#allocation7], 128
    $region69: #{tpu_custom_call.1} parent=1 // pred_fallthru
      _
    // Predicated region
    $region70: #{tpu_custom_call.1} parent=1 // pred_check
      _
    $region71: #{tpu_custom_call.1} parent=1 // pred_check_branch
      %985 = sbr.rel (0) target = $region73
    $region72: #{tpu_custom_call.1} parent=1 // pred_region
      %987 = dma.done [#allocation16], 16
    $region73: #{tpu_custom_call.1} parent=1 // pred_fallthru
      _
    %988 = vsyncpa [#allocation6], 1
    %989 = vsyncpa [#allocation9], 1
    %990 = vsyncpa [#allocation12], 1
    %991 = vsyncpa [#allocation7], 1
    %992 = vsyncpa [#allocation16], 1

</llo_original>
